<compile_context>
chip_gen: v5e
topology: v5e:2x2
jax: 0.10.0
libtpu: 0.0.40
codegen_flags: <defaults>
</compile_context>

<pallas_src>
import functools

import jax
import jax.numpy as jnp
from jax.experimental import pallas as pl
from jax.experimental.pallas import tpu as pltpu

EPS = 1e-5
LANE = 128


def _round_up(n, m):
    return ((n + m - 1) // m) * m


def _pad_axis(x, target, axis):
    pad = target - x.shape[axis]
    if pad <= 0:
        return x
    widths = [(0, 0)] * x.ndim
    widths[axis] = (0, pad)
    return jnp.pad(x, widths)


# ----------------------------------------------------------------------------
# Kernel
# ----------------------------------------------------------------------------
def _bn_train(x, gamma, beta, inv_n):
    """Training-mode BatchNorm1d, one-pass stats (biased variance, eps=1e-5)."""
    s1 = jnp.sum(x, axis=0, keepdims=True)
    s2 = jnp.sum(x * x, axis=0, keepdims=True)
    mean = s1 * inv_n
    var = jnp.maximum(s2 * inv_n - mean * mean, 0.0)
    scale = gamma * jax.lax.rsqrt(var + EPS)          # EUP rsqrt, gamma folded
    return (x - mean) * scale + beta


def _critic_kernel(n_bn0, x_ref, w1_ref, w2_ref, w3_ref, pp_ref, o_ref):
    # pp_ref rows: 0 g0 | 1 b0 | 2 g1 | 3 b1 | 4 g2 | 5 b2 | 6 g3 | 7 b3
    #              8 w4 | 9 bias4 (broadcast across lanes)
    B, Dp = x_ref.shape
    Hp = w1_ref.shape[1]
    inv_n = 1.0 / float(B)                            # static batch size
    f32, bf16 = jnp.float32, jnp.bfloat16

    # ---- bn_input on the first n_bn0 lanes ([input, discrete_a]) only ------
    x = x_ref[...]
    bn0 = _bn_train(x, pp_ref[0:1, :Dp], pp_ref[1:2, :Dp], inv_n)
    lane = jax.lax.broadcasted_iota(jnp.int32, (B, Dp), 1)
    obs = jnp.where(lane < n_bn0, bn0, x)             # action lanes pass raw

    # ---- Linear 1 (fused concat) + BN + ReLU  (bias1 is a pre-BN no-op) ----
    h = jnp.dot(obs.astype(bf16), w1_ref[...], preferred_element_type=f32)
    h = jnp.maximum(_bn_train(h, pp_ref[2:3, :Hp], pp_ref[3:4, :Hp], inv_n), 0.0)

    # ---- Linear 2 + BN + ReLU ----------------------------------------------
    h = jnp.dot(h.astype(bf16), w2_ref[...], preferred_element_type=f32)
    h = jnp.maximum(_bn_train(h, pp_ref[4:5, :Hp], pp_ref[5:6, :Hp], inv_n), 0.0)

    # ---- Linear 3 + BN + ReLU ----------------------------------------------
    h = jnp.dot(h.astype(bf16), w3_ref[...], preferred_element_type=f32)
    h = jnp.maximum(_bn_train(h, pp_ref[6:7, :Hp], pp_ref[7:8, :Hp], inv_n), 0.0)

    # ---- Final Linear (hidden -> 1) on the VPU, lane-dense output slab -----
    q = jnp.sum(h * pp_ref[8:9, :Hp], axis=-1, keepdims=True)        # (B, 1)
    b4_row = pp_ref[9:10, :o_ref.shape[1]]                           # (1, 128)
    o_ref[...] = jnp.broadcast_to(q, o_ref.shape) + b4_row


# ----------------------------------------------------------------------------
# One-time parameter preparation (hoisted out of the per-call jitted path)
# ----------------------------------------------------------------------------
def prepare_critic_params(params, input_dims, c_action_nums):
    D, A, Dd = input_dims, c_action_nums, 1
    H = params["w2"].shape[0]
    d_total = D + Dd + A
    Dp, Hp = _round_up(d_total, LANE), _round_up(H, LANE)
    Wpp = max(Dp, Hp)
    f32, bf16 = jnp.float32, jnp.bfloat16

    # Linear weights, zero-padded, stored bf16 (MXU-native, half the DMA).
    # w1 rows are already in the fused concat order: [input | discrete_a | action].
    w1 = _pad_axis(_pad_axis(params["w1"].astype(f32), Dp, 0), Hp, 1).astype(bf16)
    w2 = _pad_axis(_pad_axis(params["w2"].astype(f32), Hp, 0), Hp, 1).astype(bf16)
    w3 = _pad_axis(_pad_axis(params["w3"].astype(f32), Hp, 0), Hp, 1).astype(bf16)

    def row(v):
        return _pad_axis(jnp.asarray(v, f32).reshape(1, -1), Wpp, 1)

    pp = jnp.concatenate(
        [
            row(params["bn0_g"]), row(params["bn0_b"]),        # rows 0,1
            row(params["bn1_g"]), row(params["bn1_b"]),        # rows 2,3
            row(params["bn2_g"]), row(params["bn2_b"]),        # rows 4,5
            row(params["bn3_g"]), row(params["bn3_b"]),        # rows 6,7
            row(params["w4"].reshape(-1)),                     # row 8
            jnp.full((1, Wpp), jnp.asarray(params["b4"], f32).reshape(()),
                     dtype=f32),                               # row 9
        ],
        axis=0,
    )
    # NOTE: b1/b2/b3 are intentionally dropped (exact no-op before training BN).
    return dict(w1=w1, w2=w2, w3=w3, pp=pp, n_bn0=D + Dd)


# ----------------------------------------------------------------------------
# Forward
# ----------------------------------------------------------------------------
@functools.partial(jax.jit, static_argnames=("n_bn0",))
def _critic_forward(x_in, x_da, x_act, w1, w2, w3, pp, *, n_bn0):
    B = x_in.shape[0]
    Dp = w1.shape[0]
    f32 = jnp.float32

    x = jnp.concatenate(
        [x_in.astype(f32), x_da.astype(f32), x_act.astype(f32)], axis=1)
    x = _pad_axis(x, Dp, 1)                                     # (B, Dp)

    kernel = functools.partial(_critic_kernel, n_bn0)

    def full_spec(shape):
        return pl.BlockSpec(shape, lambda i: (0, 0))

    out = pl.pallas_call(
        kernel,
        out_shape=jax.ShapeDtypeStruct((B, LANE), f32),
        grid=(1,),
        in_specs=[full_spec(x.shape), full_spec(w1.shape),
                  full_spec(w2.shape), full_spec(w3.shape),
                  full_spec(pp.shape)],
        out_specs=full_spec((B, LANE)),
        compiler_params=pltpu.CompilerParams(
            dimension_semantics=("arbitrary",),
            vmem_limit_bytes=32 * 1024 * 1024,
        ),
    )(x, w1, w2, w3, pp)

    return out[:, :1]                                           # (B, 1) Q values


def critic_forward(x_input, x_action, x_discrete_a, prepared):
    """Matches PyTorch Critic.forward(input, action, discrete_a)."""
    return _critic_forward(
        x_input, x_discrete_a, x_action,
        prepared["w1"], prepared["w2"], prepared["w3"], prepared["pp"],
        n_bn0=prepared["n_bn0"])


# ----------------------------------------------------------------------------
# Parameter construction + pure-JAX f32 reference (mirrors PyTorch semantics)
# ----------------------------------------------------------------------------
def make_critic_params(key, input_dims, c_action_nums, hidden=300):
    D, A, H = input_dims, c_action_nums, hidden
    deep_in = D + 1 + A
    ks = jax.random.split(key, 16)

    def linear(kw, kb, fan_in, fan_out):
        bound = float(fan_in) ** -0.5
        w = jax.random.uniform(kw, (fan_in, fan_out), jnp.float32, -bound, bound)
        b = jax.random.uniform(kb, (fan_out,), jnp.float32, -bound, bound)
        return w, b

    w1, b1 = linear(ks[0], ks[1], deep_in, H)
    w2, b2 = linear(ks[2], ks[3], H, H)
    w3, b3 = linear(ks[4], ks[5], H, H)
    w4, b4 = linear(ks[6], ks[7], H, 1)

    def bn(kg, kb, f):
        g = jax.random.uniform(kg, (f,), jnp.float32, 0.8, 1.2)
        b = jax.random.uniform(kb, (f,), jnp.float32, -0.1, 0.1)
        return g, b

    bn0_g, bn0_b = bn(ks[8], ks[9], D + 1)
    bn1_g, bn1_b = bn(ks[10], ks[11], H)
    bn2_g, bn2_b = bn(ks[12], ks[13], H)
    bn3_g, bn3_b = bn(ks[14], ks[15], H)

    return dict(w1=w1, b1=b1, w2=w2, b2=b2, w3=w3, b3=b3, w4=w4, b4=b4,
                bn0_g=bn0_g, bn0_b=bn0_b, bn1_g=bn1_g, bn1_b=bn1_b,
                bn2_g=bn2_g, bn2_b=bn2_b, bn3_g=bn3_g, bn3_b=bn3_b)


def critic_reference(x_in, x_da, x_act, p):
    def bn(x, g, b):
        m = jnp.mean(x, axis=0, keepdims=True)
        v = jnp.mean((x - m) ** 2, axis=0, keepdims=True)       # biased variance
        return (x - m) * (g / jnp.sqrt(v + EPS)) + b

    obs = bn(jnp.concatenate([x_in, x_da], axis=1), p["bn0_g"], p["bn0_b"])
    h = jnp.concatenate([obs, x_act], axis=1)
    h = jax.nn.relu(bn(h @ p["w1"] + p["b1"], p["bn1_g"], p["bn1_b"]))
    h = jax.nn.relu(bn(h @ p["w2"] + p["b2"], p["bn2_g"], p["bn2_b"]))
    h = jax.nn.relu(bn(h @ p["w3"] + p["b3"], p["bn3_g"], p["bn3_b"]))
    return h @ p["w4"] + p["b4"]


# ----------------------------------------------------------------------------
if __name__ == "__main__":
    key = jax.random.PRNGKey(0)
    kp, kx, kd, ka = jax.random.split(key, 4)

    B, D, A = 64, 16, 4            # batch, input_dims, c_action_nums
    params = make_critic_params(kp, D, A)
    prepared = prepare_critic_params(params, D, A)

    x_in = jax.random.normal(kx, (B, D), jnp.float32)
    x_da = jax.random.normal(kd, (B, 1), jnp.float32)     # discrete_a column
    x_act = jax.random.normal(ka, (B, A), jnp.float32)    # continuous action

    q = jax.block_until_ready(critic_forward(x_in, x_act, x_da, prepared))
    q_ref = critic_reference(x_in, x_da, x_act, params)

    assert q.shape == (B, 1), q.shape
    # bf16-fed MXU (f32 accumulate) + one-pass BN stats: errors stay ~1e-3
    # because BN re-normalizes every layer; tolerance reflects bf16 inputs.
    max_err = float(jnp.max(jnp.abs(q - q_ref)))
    if not max_err < 2e-2:
        raise AssertionError(f"kernel mismatch vs reference: max_err={max_err}")
    print("KERNEL_OK")
</pallas_src>

<mosaic_0001>
module attributes {stable_mosaic.version = 11 : i64} {
  func.func @_critic_kernel(%arg0: i32, %arg1: memref<64x128xf32, #tpu.memory_space<vmem>>, %arg2: memref<128x384xbf16, #tpu.memory_space<vmem>>, %arg3: memref<384x384xbf16, #tpu.memory_space<vmem>>, %arg4: memref<384x384xbf16, #tpu.memory_space<vmem>>, %arg5: memref<10x384xf32, #tpu.memory_space<vmem>>, %arg6: memref<64x128xf32, #tpu.memory_space<vmem>>) attributes {dimension_semantics = [#tpu.dimension_semantics<arbitrary>], iteration_bounds = array<i64: 1>, scalar_prefetch = 0 : i64, scratch_operands = 0 : i64, tpu.core_type = #tpu.core_type<tc>, window_params = [{pipeline_mode = #tpu.pipeline_mode<synchronous>, transform_indices = @transform_0, window_bounds = array<i64: 64, 128>}, {pipeline_mode = #tpu.pipeline_mode<synchronous>, transform_indices = @transform_1, window_bounds = array<i64: 128, 384>}, {pipeline_mode = #tpu.pipeline_mode<synchronous>, transform_indices = @transform_2, window_bounds = array<i64: 384, 384>}, {pipeline_mode = #tpu.pipeline_mode<synchronous>, transform_indices = @transform_3, window_bounds = array<i64: 384, 384>}, {pipeline_mode = #tpu.pipeline_mode<synchronous>, transform_indices = @transform_4, window_bounds = array<i64: 10, 384>}, {pipeline_mode = #tpu.pipeline_mode<synchronous>, transform_indices = @transform_5, window_bounds = array<i64: 64, 128>}]} {
    %c0 = arith.constant 0 : index
    %c0_0 = arith.constant 0 : index
    %0 = vector.load %arg1[%c0, %c0_0] : memref<64x128xf32, #tpu.memory_space<vmem>>, vector<64x128xf32>
    %c0_1 = arith.constant 0 : index
    %c0_2 = arith.constant 0 : index
    %1 = vector.load %arg5[%c0_1, %c0_2] : memref<10x384xf32, #tpu.memory_space<vmem>>, vector<1x128xf32>
    %c1 = arith.constant 1 : index
    %c0_3 = arith.constant 0 : index
    %2 = vector.load %arg5[%c1, %c0_3] : memref<10x384xf32, #tpu.memory_space<vmem>>, vector<1x128xf32>
    %cst = arith.constant dense<0.000000e+00> : vector<128xf32>
    %3 = vector.multi_reduction <add>, %0, %cst [0] : vector<64x128xf32> to vector<128xf32>
    %4 = vector.shape_cast %3 : vector<128xf32> to vector<1x128xf32>
    %5 = arith.mulf %0, %0 : vector<64x128xf32>
    %cst_4 = arith.constant dense<0.000000e+00> : vector<128xf32>
    %6 = vector.multi_reduction <add>, %5, %cst_4 [0] : vector<64x128xf32> to vector<128xf32>
    %7 = vector.shape_cast %6 : vector<128xf32> to vector<1x128xf32>
    %cst_5 = arith.constant 1.562500e-02 : f32
    %8 = vector.broadcast %cst_5 : f32 to vector<1x128xf32>
    %9 = arith.mulf %4, %8 : vector<1x128xf32>
    %cst_6 = arith.constant 1.562500e-02 : f32
    %10 = vector.broadcast %cst_6 : f32 to vector<1x128xf32>
    %11 = arith.mulf %7, %10 : vector<1x128xf32>
    %12 = arith.mulf %9, %9 : vector<1x128xf32>
    %13 = arith.subf %11, %12 : vector<1x128xf32>
    %cst_7 = arith.constant 0.000000e+00 : f32
    %14 = vector.broadcast %cst_7 : f32 to vector<1x128xf32>
    %15 = arith.maximumf %13, %14 : vector<1x128xf32>
    %cst_8 = arith.constant 9.99999974E-6 : f32
    %16 = vector.broadcast %cst_8 : f32 to vector<1x128xf32>
    %17 = arith.addf %15, %16 : vector<1x128xf32>
    %18 = math.rsqrt %17 : vector<1x128xf32>
    %19 = arith.mulf %1, %18 : vector<1x128xf32>
    %20 = vector.broadcast %9 : vector<1x128xf32> to vector<64x128xf32>
    %21 = arith.subf %0, %20 : vector<64x128xf32>
    %22 = vector.broadcast %19 : vector<1x128xf32> to vector<64x128xf32>
    %23 = arith.mulf %21, %22 : vector<64x128xf32>
    %24 = vector.broadcast %2 : vector<1x128xf32> to vector<64x128xf32>
    %25 = arith.addf %23, %24 : vector<64x128xf32>
    %26 = tpu.iota {dimensions = array<i32: 1>} : vector<64x128xi32>
    %c17_i32 = arith.constant 17 : i32
    %27 = vector.broadcast %c17_i32 : i32 to vector<64x128xi32>
    %28 = arith.cmpi slt, %26, %27 : vector<64x128xi32>
    %29 = arith.select %28, %25, %0 : vector<64x128xi1>, vector<64x128xf32>
    %30 = arith.truncf %29 : vector<64x128xf32> to vector<64x128xbf16>
    %c0_9 = arith.constant 0 : index
    %c0_10 = arith.constant 0 : index
    %31 = vector.load %arg2[%c0_9, %c0_10] : memref<128x384xbf16, #tpu.memory_space<vmem>>, vector<128x384xbf16>
    %cst_11 = arith.constant dense<0.000000e+00> : vector<64x384xf32>
    %32 = tpu.matmul %30, %31, %cst_11 {dimension_numbers = #tpu.dot_dimension_numbers<[1], [0], [0], [1], [0, 0, 1, 1], [], []>} : vector<64x128xbf16>, vector<128x384xbf16>, vector<64x384xf32> -> vector<64x384xf32>
    %c2 = arith.constant 2 : index
    %c0_12 = arith.constant 0 : index
    %33 = vector.load %arg5[%c2, %c0_12] : memref<10x384xf32, #tpu.memory_space<vmem>>, vector<1x384xf32>
    %c3 = arith.constant 3 : index
    %c0_13 = arith.constant 0 : index
    %34 = vector.load %arg5[%c3, %c0_13] : memref<10x384xf32, #tpu.memory_space<vmem>>, vector<1x384xf32>
    %cst_14 = arith.constant dense<0.000000e+00> : vector<384xf32>
    %35 = vector.multi_reduction <add>, %32, %cst_14 [0] : vector<64x384xf32> to vector<384xf32>
    %36 = vector.shape_cast %35 : vector<384xf32> to vector<1x384xf32>
    %37 = arith.mulf %32, %32 : vector<64x384xf32>
    %cst_15 = arith.constant dense<0.000000e+00> : vector<384xf32>
    %38 = vector.multi_reduction <add>, %37, %cst_15 [0] : vector<64x384xf32> to vector<384xf32>
    %39 = vector.shape_cast %38 : vector<384xf32> to vector<1x384xf32>
    %cst_16 = arith.constant 1.562500e-02 : f32
    %40 = vector.broadcast %cst_16 : f32 to vector<1x384xf32>
    %41 = arith.mulf %36, %40 : vector<1x384xf32>
    %cst_17 = arith.constant 1.562500e-02 : f32
    %42 = vector.broadcast %cst_17 : f32 to vector<1x384xf32>
    %43 = arith.mulf %39, %42 : vector<1x384xf32>
    %44 = arith.mulf %41, %41 : vector<1x384xf32>
    %45 = arith.subf %43, %44 : vector<1x384xf32>
    %cst_18 = arith.constant 0.000000e+00 : f32
    %46 = vector.broadcast %cst_18 : f32 to vector<1x384xf32>
    %47 = arith.maximumf %45, %46 : vector<1x384xf32>
    %cst_19 = arith.constant 9.99999974E-6 : f32
    %48 = vector.broadcast %cst_19 : f32 to vector<1x384xf32>
    %49 = arith.addf %47, %48 : vector<1x384xf32>
    %50 = math.rsqrt %49 : vector<1x384xf32>
    %51 = arith.mulf %33, %50 : vector<1x384xf32>
    %52 = vector.broadcast %41 : vector<1x384xf32> to vector<64x384xf32>
    %53 = arith.subf %32, %52 : vector<64x384xf32>
    %54 = vector.broadcast %51 : vector<1x384xf32> to vector<64x384xf32>
    %55 = arith.mulf %53, %54 : vector<64x384xf32>
    %56 = vector.broadcast %34 : vector<1x384xf32> to vector<64x384xf32>
    %57 = arith.addf %55, %56 : vector<64x384xf32>
    %cst_20 = arith.constant 0.000000e+00 : f32
    %58 = vector.broadcast %cst_20 : f32 to vector<64x384xf32>
    %59 = arith.maximumf %57, %58 : vector<64x384xf32>
    %60 = arith.truncf %59 : vector<64x384xf32> to vector<64x384xbf16>
    %c0_21 = arith.constant 0 : index
    %c0_22 = arith.constant 0 : index
    %61 = vector.load %arg3[%c0_21, %c0_22] : memref<384x384xbf16, #tpu.memory_space<vmem>>, vector<384x384xbf16>
    %cst_23 = arith.constant dense<0.000000e+00> : vector<64x384xf32>
    %62 = tpu.matmul %60, %61, %cst_23 {dimension_numbers = #tpu.dot_dimension_numbers<[1], [0], [0], [1], [0, 0, 1, 1], [], []>} : vector<64x384xbf16>, vector<384x384xbf16>, vector<64x384xf32> -> vector<64x384xf32>
    %c4 = arith.constant 4 : index
    %c0_24 = arith.constant 0 : index
    %63 = vector.load %arg5[%c4, %c0_24] : memref<10x384xf32, #tpu.memory_space<vmem>>, vector<1x384xf32>
    %c5 = arith.constant 5 : index
    %c0_25 = arith.constant 0 : index
    %64 = vector.load %arg5[%c5, %c0_25] : memref<10x384xf32, #tpu.memory_space<vmem>>, vector<1x384xf32>
    %cst_26 = arith.constant dense<0.000000e+00> : vector<384xf32>
    %65 = vector.multi_reduction <add>, %62, %cst_26 [0] : vector<64x384xf32> to vector<384xf32>
    %66 = vector.shape_cast %65 : vector<384xf32> to vector<1x384xf32>
    %67 = arith.mulf %62, %62 : vector<64x384xf32>
    %cst_27 = arith.constant dense<0.000000e+00> : vector<384xf32>
    %68 = vector.multi_reduction <add>, %67, %cst_27 [0] : vector<64x384xf32> to vector<384xf32>
    %69 = vector.shape_cast %68 : vector<384xf32> to vector<1x384xf32>
    %cst_28 = arith.constant 1.562500e-02 : f32
    %70 = vector.broadcast %cst_28 : f32 to vector<1x384xf32>
    %71 = arith.mulf %66, %70 : vector<1x384xf32>
    %cst_29 = arith.constant 1.562500e-02 : f32
    %72 = vector.broadcast %cst_29 : f32 to vector<1x384xf32>
    %73 = arith.mulf %69, %72 : vector<1x384xf32>
    %74 = arith.mulf %71, %71 : vector<1x384xf32>
    %75 = arith.subf %73, %74 : vector<1x384xf32>
    %cst_30 = arith.constant 0.000000e+00 : f32
    %76 = vector.broadcast %cst_30 : f32 to vector<1x384xf32>
    %77 = arith.maximumf %75, %76 : vector<1x384xf32>
    %cst_31 = arith.constant 9.99999974E-6 : f32
    %78 = vector.broadcast %cst_31 : f32 to vector<1x384xf32>
    %79 = arith.addf %77, %78 : vector<1x384xf32>
    %80 = math.rsqrt %79 : vector<1x384xf32>
    %81 = arith.mulf %63, %80 : vector<1x384xf32>
    %82 = vector.broadcast %71 : vector<1x384xf32> to vector<64x384xf32>
    %83 = arith.subf %62, %82 : vector<64x384xf32>
    %84 = vector.broadcast %81 : vector<1x384xf32> to vector<64x384xf32>
    %85 = arith.mulf %83, %84 : vector<64x384xf32>
    %86 = vector.broadcast %64 : vector<1x384xf32> to vector<64x384xf32>
    %87 = arith.addf %85, %86 : vector<64x384xf32>
    %cst_32 = arith.constant 0.000000e+00 : f32
    %88 = vector.broadcast %cst_32 : f32 to vector<64x384xf32>
    %89 = arith.maximumf %87, %88 : vector<64x384xf32>
    %90 = arith.truncf %89 : vector<64x384xf32> to vector<64x384xbf16>
    %c0_33 = arith.constant 0 : index
    %c0_34 = arith.constant 0 : index
    %91 = vector.load %arg4[%c0_33, %c0_34] : memref<384x384xbf16, #tpu.memory_space<vmem>>, vector<384x384xbf16>
    %cst_35 = arith.constant dense<0.000000e+00> : vector<64x384xf32>
    %92 = tpu.matmul %90, %91, %cst_35 {dimension_numbers = #tpu.dot_dimension_numbers<[1], [0], [0], [1], [0, 0, 1, 1], [], []>} : vector<64x384xbf16>, vector<384x384xbf16>, vector<64x384xf32> -> vector<64x384xf32>
    %c6 = arith.constant 6 : index
    %c0_36 = arith.constant 0 : index
    %93 = vector.load %arg5[%c6, %c0_36] : memref<10x384xf32, #tpu.memory_space<vmem>>, vector<1x384xf32>
    %c7 = arith.constant 7 : index
    %c0_37 = arith.constant 0 : index
    %94 = vector.load %arg5[%c7, %c0_37] : memref<10x384xf32, #tpu.memory_space<vmem>>, vector<1x384xf32>
    %cst_38 = arith.constant dense<0.000000e+00> : vector<384xf32>
    %95 = vector.multi_reduction <add>, %92, %cst_38 [0] : vector<64x384xf32> to vector<384xf32>
    %96 = vector.shape_cast %95 : vector<384xf32> to vector<1x384xf32>
    %97 = arith.mulf %92, %92 : vector<64x384xf32>
    %cst_39 = arith.constant dense<0.000000e+00> : vector<384xf32>
    %98 = vector.multi_reduction <add>, %97, %cst_39 [0] : vector<64x384xf32> to vector<384xf32>
    %99 = vector.shape_cast %98 : vector<384xf32> to vector<1x384xf32>
    %cst_40 = arith.constant 1.562500e-02 : f32
    %100 = vector.broadcast %cst_40 : f32 to vector<1x384xf32>
    %101 = arith.mulf %96, %100 : vector<1x384xf32>
    %cst_41 = arith.constant 1.562500e-02 : f32
    %102 = vector.broadcast %cst_41 : f32 to vector<1x384xf32>
    %103 = arith.mulf %99, %102 : vector<1x384xf32>
    %104 = arith.mulf %101, %101 : vector<1x384xf32>
    %105 = arith.subf %103, %104 : vector<1x384xf32>
    %cst_42 = arith.constant 0.000000e+00 : f32
    %106 = vector.broadcast %cst_42 : f32 to vector<1x384xf32>
    %107 = arith.maximumf %105, %106 : vector<1x384xf32>
    %cst_43 = arith.constant 9.99999974E-6 : f32
    %108 = vector.broadcast %cst_43 : f32 to vector<1x384xf32>
    %109 = arith.addf %107, %108 : vector<1x384xf32>
    %110 = math.rsqrt %109 : vector<1x384xf32>
    %111 = arith.mulf %93, %110 : vector<1x384xf32>
    %112 = vector.broadcast %101 : vector<1x384xf32> to vector<64x384xf32>
    %113 = arith.subf %92, %112 : vector<64x384xf32>
    %114 = vector.broadcast %111 : vector<1x384xf32> to vector<64x384xf32>
    %115 = arith.mulf %113, %114 : vector<64x384xf32>
    %116 = vector.broadcast %94 : vector<1x384xf32> to vector<64x384xf32>
    %117 = arith.addf %115, %116 : vector<64x384xf32>
    %cst_44 = arith.constant 0.000000e+00 : f32
    %118 = vector.broadcast %cst_44 : f32 to vector<64x384xf32>
    %119 = arith.maximumf %117, %118 : vector<64x384xf32>
    %c8 = arith.constant 8 : index
    %c0_45 = arith.constant 0 : index
    %120 = vector.load %arg5[%c8, %c0_45] : memref<10x384xf32, #tpu.memory_space<vmem>>, vector<1x384xf32>
    %121 = vector.broadcast %120 : vector<1x384xf32> to vector<64x384xf32>
    %122 = arith.mulf %119, %121 : vector<64x384xf32>
    %cst_46 = arith.constant dense<0.000000e+00> : vector<64xf32>
    %123 = vector.multi_reduction <add>, %122, %cst_46 [1] : vector<64x384xf32> to vector<64xf32>
    %124 = vector.shape_cast %123 : vector<64xf32> to vector<64x1xf32>
    %c9 = arith.constant 9 : index
    %c0_47 = arith.constant 0 : index
    %125 = vector.load %arg5[%c9, %c0_47] : memref<10x384xf32, #tpu.memory_space<vmem>>, vector<1x128xf32>
    %126 = vector.shape_cast %124 : vector<64x1xf32> to vector<64x1xf32>
    %127 = vector.broadcast %126 : vector<64x1xf32> to vector<64x128xf32>
    %128 = vector.broadcast %125 : vector<1x128xf32> to vector<64x128xf32>
    %129 = arith.addf %127, %128 : vector<64x128xf32>
    %c0_48 = arith.constant 0 : index
    %c0_49 = arith.constant 0 : index
    %130 = vector.load %arg6[%c0_48, %c0_49] : memref<64x128xf32, #tpu.memory_space<vmem>>, vector<64x128xf32>
    tpu.vector_store %arg6[%c0_48, %c0_49], %129 {strides = array<i32>} : memref<64x128xf32, #tpu.memory_space<vmem>>, vector<64x128xf32>,
    return
  }
  func.func @transform_0(%arg0: i32) -> (i32, i32) {
    %c0_i32 = arith.constant 0 : i32
    %c0_i32_0 = arith.constant 0 : i32
    %c0_i32_1 = arith.constant 0 : i32
    return %c0_i32, %c0_i32_0 : i32, i32
  }
  func.func @transform_1(%arg0: i32) -> (i32, i32) {
    %c0_i32 = arith.constant 0 : i32
    %c0_i32_0 = arith.constant 0 : i32
    %c0_i32_1 = arith.constant 0 : i32
    return %c0_i32, %c0_i32_0 : i32, i32
  }
  func.func @transform_2(%arg0: i32) -> (i32, i32) {
    %c0_i32 = arith.constant 0 : i32
    %c0_i32_0 = arith.constant 0 : i32
    %c0_i32_1 = arith.constant 0 : i32
    return %c0_i32, %c0_i32_0 : i32, i32
  }
  func.func @transform_3(%arg0: i32) -> (i32, i32) {
    %c0_i32 = arith.constant 0 : i32
    %c0_i32_0 = arith.constant 0 : i32
    %c0_i32_1 = arith.constant 0 : i32
    return %c0_i32, %c0_i32_0 : i32, i32
  }
  func.func @transform_4(%arg0: i32) -> (i32, i32) {
    %c0_i32 = arith.constant 0 : i32
    %c0_i32_0 = arith.constant 0 : i32
    %c0_i32_1 = arith.constant 0 : i32
    return %c0_i32, %c0_i32_0 : i32, i32
  }
  func.func @transform_5(%arg0: i32) -> (i32, i32) {
    %c0_i32 = arith.constant 0 : i32
    %c0_i32_0 = arith.constant 0 : i32
    %c0_i32_1 = arith.constant 0 : i32
    return %c0_i32, %c0_i32_0 : i32, i32
  }
}

</mosaic_0001>

<llo_original>
// kernel: _critic_forward.1
$region0: #{_critic_forward.1}
  #allocation0 [shape = 'u32[]', space=smem, size = 0x4, offset = 0x4, fixed_abs, tag = 'smem constant byte address 0x4 - core index']
  #allocation1 [shape = 'u32[72,128]{1,0:T(1,128)}', space=vmem, size = 0x9000, scoped, tag = 'internal scratch']
  %s0 = inlined_call_operand.vmem [shape: f32[64,128], index: 0, kind: input, shape index: {}]
  %s1 = inlined_call_operand.vmem [shape: bf16[128,384], index: 1, kind: input, shape index: {}]
  %s2 = inlined_call_operand.hbm [shape: bf16[384,384], index: 2, kind: input, shape index: {}]
  %s3 = inlined_call_operand.hbm [shape: bf16[384,384], index: 3, kind: input, shape index: {}]
  %s4 = inlined_call_operand.vmem [shape: f32[10,384], index: 4, kind: input, shape index: {}]
  %s5 = inlined_call_operand.vmem [shape: f32[64,128], index: 5, kind: output, shape index: {}]
  %s6 = sld [smem:[#allocation0]]
  $region38: #{_critic_forward.1} parent=0
    _
  %s8 = ssub.s32 1, %s6
  %s9 = scalar_select 0, %s8, %s6
  $region1: #{_critic_forward.1} parent=0
    #allocation2 [shape = 'u8[294912]{0}', space=vmem, size = 0x48000, scoped, tag = 'input window, operand 2, single buffered']
    #allocation3 [shape = 's32[1]{0}', space=sflag, size = 0x4, scoped, tag = 'scoped memory for _critic_forward.1']
    #allocation4 [shape = 'u8[294912]{0}', space=vmem, size = 0x48000, scoped, tag = 'input window, operand 3, single buffered']
    #allocation5 [shape = 's32[1]{0}', space=sflag, size = 0x4, scoped, tag = 'scoped memory for _critic_forward.1']
    %10 = vsyncpa [#allocation3], 0
    %11 = vsyncpa [#allocation5], 0
    // Predicated region
    $region2: #{_critic_forward.1} parent=1 // pred_check
      _
    $region3: #{_critic_forward.1} parent=1 // pred_check_branch
      %13 = sbr.rel (0) target = $region5
    $region4: #{_critic_forward.1} parent=1 // pred_region
      _
    $region5: #{_critic_forward.1} parent=1 // pred_fallthru
      _
    // Predicated region
    $region6: #{_critic_forward.1} parent=1 // pred_check
      _
    $region7: #{_critic_forward.1} parent=1 // pred_check_branch
      %15 = sbr.rel (0) target = $region9
    $region8: #{_critic_forward.1} parent=1 // pred_region
      _
    $region9: #{_critic_forward.1} parent=1 // pred_fallthru
      _
    // Predicated region
    $region10: #{_critic_forward.1} parent=1 // pred_check
      _
    $region11: #{_critic_forward.1} parent=1 // pred_check_branch
      %17 = sbr.rel (0) target = $region13
    $region12: #{_critic_forward.1} parent=1 // pred_region
      %19 = vsyncadd [#allocation3], 0
      %s20 = sshll.u32 %s2, 4
      %s21 = int_to_ptr.hbm [resolvable:$true] %s20
      %s22 = sshll.u32 [#allocation2], 4
      %s23 = int_to_ptr.vmem [resolvable:$true] %s22
      %28 = dma.hbm_to_vmem [thread:$0]  %s21, 9216, %s23, [#allocation3], 192, 192, 12
    $region13: #{_critic_forward.1} parent=1 // pred_fallthru
      _
    // Predicated region
    $region14: #{_critic_forward.1} parent=1 // pred_check
      _
    $region15: #{_critic_forward.1} parent=1 // pred_check_branch
      %30 = sbr.rel (0) target = $region17
    $region16: #{_critic_forward.1} parent=1 // pred_region
      %32 = vsyncadd [#allocation5], 0
      %s33 = sshll.u32 %s3, 4
      %s34 = int_to_ptr.hbm [resolvable:$true] %s33
      %s35 = sshll.u32 [#allocation4], 4
      %s36 = int_to_ptr.vmem [resolvable:$true] %s35
      %41 = dma.hbm_to_vmem [thread:$0]  %s34, 9216, %s36, [#allocation5], 192, 192, 12
    $region17: #{_critic_forward.1} parent=1 // pred_fallthru
      _
    // Predicated region
    $region18: #{_critic_forward.1} parent=1 // pred_check
      _
    $region19: #{_critic_forward.1} parent=1 // pred_check_branch
      %43 = sbr.rel (0) target = $region21
    $region20: #{_critic_forward.1} parent=1 // pred_region
      _
    $region21: #{_critic_forward.1} parent=1 // pred_fallthru
      _
    // Predicated region
    $region22: #{_critic_forward.1} parent=1 // pred_check
      _
    $region23: #{_critic_forward.1} parent=1 // pred_check_branch
      %45 = sbr.rel (0) target = $region25
    $region24: #{_critic_forward.1} parent=1 // pred_region
      %47 = dma.done [#allocation3], 9216
    $region25: #{_critic_forward.1} parent=1 // pred_fallthru
      _
    // Predicated region
    $region26: #{_critic_forward.1} parent=1 // pred_check
      _
    $region27: #{_critic_forward.1} parent=1 // pred_check_branch
      %49 = sbr.rel (0) target = $region29
    $region28: #{_critic_forward.1} parent=1 // pred_region
      %51 = dma.done [#allocation5], 9216
    $region29: #{_critic_forward.1} parent=1 // pred_fallthru
      _
    %v52 = vld [vmem:[%s0] sm:$0xff]
    %v53 = vld [vmem:[%s0 + $0x8] sm:$0xff]
    %v54 = vld [vmem:[%s0 + $0x10] sm:$0xff]
    %v55 = vld [vmem:[%s0 + $0x18] sm:$0xff]
    %v56 = vld [vmem:[%s0 + $0x20] sm:$0xff]
    %v57 = vld [vmem:[%s0 + $0x28] sm:$0xff]
    %v58 = vld [vmem:[%s0 + $0x30] sm:$0xff]
    %v59 = vld [vmem:[%s0 + $0x38] sm:$0xff]
    %v60 = vld [vmem:[%s4] ss:$0 sm:$0xff]
    %v61 = vld [vmem:[%s4 + $0x1] ss:$0 sm:$0xff]
    %v62 = vadd.f32 %v52, %v53
    %v63 = vadd.f32 %v62, %v54
    %v64 = vadd.f32 %v63, %v55
    %v65 = vadd.f32 %v64, %v56
    %v66 = vadd.f32 %v65, %v57
    %v67 = vadd.f32 %v66, %v58
    %v68 = vadd.f32 %v67, %v59
    %v69 = vrot.slane %v68, 4
    %v70 = vadd.f32 %v68, %v69
    %v71 = vrot.slane %v70, 2
    %v72 = vadd.f32 %v70, %v71
    %v73 = vrot.slane %v72, 1
    %v74 = vadd.f32 %v72, %v73
    %v75 = vmul.f32 %v52, %v52
    %v76 = vmul.f32 %v53, %v53
    %v77 = vmul.f32 %v54, %v54
    %v78 = vmul.f32 %v55, %v55
    %v79 = vmul.f32 %v56, %v56
    %v80 = vmul.f32 %v57, %v57
    %v81 = vmul.f32 %v58, %v58
    %v82 = vmul.f32 %v59, %v59
    %v83 = vadd.f32 %v75, %v76
    %v84 = vadd.f32 %v83, %v77
    %v85 = vadd.f32 %v84, %v78
    %v86 = vadd.f32 %v85, %v79
    %v87 = vadd.f32 %v86, %v80
    %v88 = vadd.f32 %v87, %v81
    %v89 = vadd.f32 %v88, %v82
    %v90 = vrot.slane %v89, 4
    %v91 = vadd.f32 %v89, %v90
    %v92 = vrot.slane %v91, 2
    %v93 = vadd.f32 %v91, %v92
    %v94 = vrot.slane %v93, 1
    %v95 = vadd.f32 %v93, %v94
    %v96 = vmul.f32 %v74, 0.015625
    %v97 = vmul.f32 %v95, 0.015625
    %v98 = vmul.f32 %v96, %v96
    %v99 = vsub.f32 %v97, %v98
    %v100 = vmax.f32 %v99, 0.0
    %v101 = vadd.f32 %v100, 1e-05
    %v102 = vrsqrt.pop %v101
    %v103 = vmul.f32 %v102, %v101
    %v104 = vmul.f32 %v103, %v102
    %v105 = vmul.f32 0.5, %v104
    %v106 = vsub.f32 1.5, %v105
    %v107 = vmul.f32 %v102, %v106
    %vm108 = vweird.f32 %v101
    %vm109 = vweird.f32 %v102
    %vm110 = vmor %vm108, %vm109
    %v111 = vsel %vm110, %v102, %v107
    %v112 = vmul.f32 %v60, %v111
    %v113 = vsub.f32 %v52, %v96
    %v114 = vsub.f32 %v53, %v96
    %v115 = vsub.f32 %v54, %v96
    %v116 = vsub.f32 %v55, %v96
    %v117 = vsub.f32 %v56, %v96
    %v118 = vsub.f32 %v57, %v96
    %v119 = vsub.f32 %v58, %v96
    %v120 = vsub.f32 %v59, %v96
    %v121 = vmul.f32 %v113, %v112
    %v122 = vmul.f32 %v114, %v112
    %v123 = vmul.f32 %v115, %v112
    %v124 = vmul.f32 %v116, %v112
    %v125 = vmul.f32 %v117, %v112
    %v126 = vmul.f32 %v118, %v112
    %v127 = vmul.f32 %v119, %v112
    %v128 = vmul.f32 %v120, %v112
    %v129 = vadd.f32 %v121, %v61
    %v130 = vadd.f32 %v122, %v61
    %v131 = vadd.f32 %v123, %v61
    %v132 = vadd.f32 %v124, %v61
    %v133 = vadd.f32 %v125, %v61
    %v134 = vadd.f32 %v126, %v61
    %v135 = vadd.f32 %v127, %v61
    %v136 = vadd.f32 %v128, %v61
    %v137 = vlaneseq
    %v138 = vand.u32 %v137, 127
    %vm139 = vcmp.lt.s32.totalorder %v138, 17
    %v140 = vsel %vm139, %v129, %v52
    %v141 = vsel %vm139, %v130, %v53
    %v142 = vsel %vm139, %v131, %v54
    %v143 = vsel %vm139, %v132, %v55
    %v144 = vsel %vm139, %v133, %v56
    %v145 = vsel %vm139, %v134, %v57
    %v146 = vsel %vm139, %v135, %v58
    %v147 = vsel %vm139, %v136, %v59
    %v148 = vpack.c.bf16 %v141, %v140
    %v149 = vpack.c.bf16 %v143, %v142
    %v150 = vpack.c.bf16 %v145, %v144
    %v151 = vpack.c.bf16 %v147, %v146
    %v152 = vld [vmem:[%s1] sm:$0xff]
    %v153 = vld [vmem:[%s1 + $0x8] sm:$0xf]
    %v154 = vld [vmem:[%s1 + $0xc] sm:$0xff]
    %v155 = vld [vmem:[%s1 + $0x14] sm:$0xf]
    %v156 = vld [vmem:[%s1 + $0x18] sm:$0xff]
    %v157 = vld [vmem:[%s1 + $0x20] sm:$0xf]
    %v158 = vld [vmem:[%s1 + $0x24] sm:$0xff]
    %v159 = vld [vmem:[%s1 + $0x2c] sm:$0xf]
    %v160 = vld [vmem:[%s1 + $0x30] sm:$0xff]
    %v161 = vld [vmem:[%s1 + $0x38] sm:$0xf]
    %v162 = vld [vmem:[%s1 + $0x3c] sm:$0xff]
    %v163 = vld [vmem:[%s1 + $0x44] sm:$0xf]
    %v164 = vld [vmem:[%s1 + $0x48] sm:$0xff]
    %v165 = vld [vmem:[%s1 + $0x50] sm:$0xf]
    %v166 = vld [vmem:[%s1 + $0x54] sm:$0xff]
    %v167 = vld [vmem:[%s1 + $0x5c] sm:$0xf]
    %v168 = vld [vmem:[%s1 + $0x60] sm:$0xff]
    %v169 = vld [vmem:[%s1 + $0x68] sm:$0xf]
    %v170 = vld [vmem:[%s1 + $0x6c] sm:$0xff]
    %v171 = vld [vmem:[%s1 + $0x74] sm:$0xf]
    %v172 = vld [vmem:[%s1 + $0x78] sm:$0xff]
    %v173 = vld [vmem:[%s1 + $0x80] sm:$0xf]
    %v174 = vld [vmem:[%s1 + $0x84] sm:$0xff]
    %v175 = vld [vmem:[%s1 + $0x8c] sm:$0xf]
    %v176 = vld [vmem:[%s1 + $0x90] sm:$0xff]
    %v177 = vld [vmem:[%s1 + $0x98] sm:$0xf]
    %v178 = vld [vmem:[%s1 + $0x9c] sm:$0xff]
    %v179 = vld [vmem:[%s1 + $0xa4] sm:$0xf]
    %v180 = vld [vmem:[%s1 + $0xa8] sm:$0xff]
    %v181 = vld [vmem:[%s1 + $0xb0] sm:$0xf]
    %v182 = vld [vmem:[%s1 + $0xb4] sm:$0xff]
    %v183 = vld [vmem:[%s1 + $0xbc] sm:$0xf]
    %v216 = vunpack.c.l.b16 %v152
    %v217 = vunpack.c.h.b16 %v152
    %v218 = vunpack.c.l.b16 %v153
    %v219 = vunpack.c.l.b16 %v154
    %v220 = vunpack.c.h.b16 %v154
    %v221 = vunpack.c.l.b16 %v155
    %v222 = vunpack.c.l.b16 %v156
    %v223 = vunpack.c.h.b16 %v156
    %v224 = vunpack.c.l.b16 %v157
    %v225 = vunpack.c.l.b16 %v158
    %v226 = vunpack.c.h.b16 %v158
    %v227 = vunpack.c.l.b16 %v159
    %v228 = vunpack.c.l.b16 %v160
    %v229 = vunpack.c.h.b16 %v160
    %v230 = vunpack.c.l.b16 %v161
    %v231 = vunpack.c.l.b16 %v162
    %v232 = vunpack.c.h.b16 %v162
    %v233 = vunpack.c.l.b16 %v163
    %v234 = vunpack.c.l.b16 %v164
    %v235 = vunpack.c.h.b16 %v164
    %v236 = vunpack.c.l.b16 %v165
    %v237 = vunpack.c.l.b16 %v166
    %v238 = vunpack.c.h.b16 %v166
    %v239 = vunpack.c.l.b16 %v167
    %v240 = vunpack.c.l.b16 %v168
    %v241 = vunpack.c.h.b16 %v168
    %v242 = vunpack.c.l.b16 %v169
    %v243 = vunpack.c.l.b16 %v170
    %v244 = vunpack.c.h.b16 %v170
    %v245 = vunpack.c.l.b16 %v171
    %v246 = vunpack.c.l.b16 %v172
    %v247 = vunpack.c.h.b16 %v172
    %v248 = vunpack.c.l.b16 %v173
    %v249 = vunpack.c.l.b16 %v174
    %v250 = vunpack.c.h.b16 %v174
    %v251 = vunpack.c.l.b16 %v175
    %v252 = vunpack.c.l.b16 %v176
    %v253 = vunpack.c.h.b16 %v176
    %v254 = vunpack.c.l.b16 %v177
    %v255 = vunpack.c.l.b16 %v178
    %v256 = vunpack.c.h.b16 %v178
    %v257 = vunpack.c.l.b16 %v179
    %v258 = vunpack.c.l.b16 %v180
    %v259 = vunpack.c.h.b16 %v180
    %v260 = vunpack.c.l.b16 %v181
    %v261 = vunpack.c.l.b16 %v182
    %v262 = vunpack.c.h.b16 %v182
    %v263 = vunpack.c.l.b16 %v183
    %v264 = vpack.c.b16 %v219, %v216
    %v265 = vpack.c.b16 %v220, %v217
    %v266 = vpack.c.b16 %v221, %v218
    %v267 = vpack.c.b16 %v225, %v222
    %v268 = vpack.c.b16 %v226, %v223
    %v269 = vpack.c.b16 %v227, %v224
    %v270 = vpack.c.b16 %v231, %v228
    %v271 = vpack.c.b16 %v232, %v229
    %v272 = vpack.c.b16 %v233, %v230
    %v273 = vpack.c.b16 %v237, %v234
    %v274 = vpack.c.b16 %v238, %v235
    %v275 = vpack.c.b16 %v239, %v236
    %v276 = vpack.c.b16 %v243, %v240
    %v277 = vpack.c.b16 %v244, %v241
    %v278 = vpack.c.b16 %v245, %v242
    %v279 = vpack.c.b16 %v249, %v246
    %v280 = vpack.c.b16 %v250, %v247
    %v281 = vpack.c.b16 %v251, %v248
    %v282 = vpack.c.b16 %v255, %v252
    %v283 = vpack.c.b16 %v256, %v253
    %v284 = vpack.c.b16 %v257, %v254
    %v285 = vpack.c.b16 %v261, %v258
    %v286 = vpack.c.b16 %v262, %v259
    %v287 = vpack.c.b16 %v263, %v260
    %312 = vmatpush.bf16.msra.mxu0 %v285
    %313 = vmatpush.bf16.msra.mxu0 %v282
    %314 = vmatpush.bf16.msra.mxu0 %v279
    %315 = vmatpush.bf16.msra.mxu0 %v276
    %316 = vmatpush.bf16.msra.mxu0 %v273
    %317 = vmatpush.bf16.msra.mxu0 %v270
    %318 = vmatpush.bf16.msra.mxu0 %v267
    %319 = vmatpush.bf16.msra.mxu0 %v264
    %320 = vmatmul.bf16.gmra.mxu0 %v148
    %v321 = vpop.f32.mrf.mxu0
    %v322 = vadd.f32 0.0, %v321
    %v323 = vpop.f32.mrf.mxu0
    %v324 = vadd.f32 0.0, %v323
    %325 = vmatmul.bf16.gmra.mxu0 %v149
    %v326 = vpop.f32.mrf.mxu0
    %v327 = vadd.f32 0.0, %v326
    %v328 = vpop.f32.mrf.mxu0
    %v329 = vadd.f32 0.0, %v328
    %330 = vmatmul.bf16.gmra.mxu0 %v150
    %v331 = vpop.f32.mrf.mxu0
    %v332 = vadd.f32 0.0, %v331
    %v333 = vpop.f32.mrf.mxu0
    %v334 = vadd.f32 0.0, %v333
    %335 = vmatmul.bf16.gmra.mxu0 %v151
    %v336 = vpop.f32.mrf.mxu0
    %v337 = vadd.f32 0.0, %v336
    %v338 = vpop.f32.mrf.mxu0
    %v339 = vadd.f32 0.0, %v338
    %340 = vdwg.mxu0
    %341 = vmatpush.bf16.msra.mxu0 %v286
    %342 = vmatpush.bf16.msra.mxu0 %v283
    %343 = vmatpush.bf16.msra.mxu0 %v280
    %344 = vmatpush.bf16.msra.mxu0 %v277
    %345 = vmatpush.bf16.msra.mxu0 %v274
    %346 = vmatpush.bf16.msra.mxu0 %v271
    %347 = vmatpush.bf16.msra.mxu0 %v268
    %348 = vmatpush.bf16.msra.mxu0 %v265
    %349 = vmatmul.bf16.gmra.mxu0 %v148
    %v350 = vpop.f32.mrf.mxu0
    %v351 = vadd.f32 0.0, %v350
    %v352 = vpop.f32.mrf.mxu0
    %v353 = vadd.f32 0.0, %v352
    %354 = vmatmul.bf16.gmra.mxu0 %v149
    %v355 = vpop.f32.mrf.mxu0
    %v356 = vadd.f32 0.0, %v355
    %v357 = vpop.f32.mrf.mxu0
    %v358 = vadd.f32 0.0, %v357
    %359 = vmatmul.bf16.gmra.mxu0 %v150
    %v360 = vpop.f32.mrf.mxu0
    %v361 = vadd.f32 0.0, %v360
    %v362 = vpop.f32.mrf.mxu0
    %v363 = vadd.f32 0.0, %v362
    %364 = vmatmul.bf16.gmra.mxu0 %v151
    %v365 = vpop.f32.mrf.mxu0
    %v366 = vadd.f32 0.0, %v365
    %v367 = vpop.f32.mrf.mxu0
    %v368 = vadd.f32 0.0, %v367
    %369 = vdwg.mxu0
    %370 = vmatpush.bf16.msra.mxu0 %v287
    %371 = vmatpush.bf16.msra.mxu0 %v284
    %372 = vmatpush.bf16.msra.mxu0 %v281
    %373 = vmatpush.bf16.msra.mxu0 %v278
    %374 = vmatpush.bf16.msra.mxu0 %v275
    %375 = vmatpush.bf16.msra.mxu0 %v272
    %376 = vmatpush.bf16.msra.mxu0 %v269
    %377 = vmatpush.bf16.msra.mxu0 %v266
    %378 = vmatmul.bf16.gmra.mxu0 %v148
    %v379 = vpop.f32.mrf.mxu0
    %v380 = vadd.f32 0.0, %v379
    %v381 = vpop.f32.mrf.mxu0
    %v382 = vadd.f32 0.0, %v381
    %383 = vmatmul.bf16.gmra.mxu0 %v149
    %v384 = vpop.f32.mrf.mxu0
    %v385 = vadd.f32 0.0, %v384
    %v386 = vpop.f32.mrf.mxu0
    %v387 = vadd.f32 0.0, %v386
    %388 = vmatmul.bf16.gmra.mxu0 %v150
    %v389 = vpop.f32.mrf.mxu0
    %v390 = vadd.f32 0.0, %v389
    %v391 = vpop.f32.mrf.mxu0
    %v392 = vadd.f32 0.0, %v391
    %393 = vmatmul.bf16.gmra.mxu0 %v151
    %v394 = vpop.f32.mrf.mxu0
    %v395 = vadd.f32 0.0, %v394
    %v396 = vpop.f32.mrf.mxu0
    %v397 = vadd.f32 0.0, %v396
    %398 = vdwg.mxu0
    %s399 = scalar_lea.vmem %s4, 2
    %v400 = vld [vmem:[%s399] ss:$8 sm:$0x7]
    %s401 = scalar_lea.vmem %s4, 3
    %v402 = vld [vmem:[%s401] ss:$8 sm:$0x7]
    %v403 = vadd.f32 %v322, %v324
    %v404 = vadd.f32 %v403, %v327
    %v405 = vadd.f32 %v404, %v329
    %v406 = vadd.f32 %v405, %v332
    %v407 = vadd.f32 %v406, %v334
    %v408 = vadd.f32 %v407, %v337
    %v409 = vadd.f32 %v408, %v339
    %v410 = vrot.slane %v409, 4
    %v411 = vadd.f32 %v409, %v410
    %v412 = vrot.slane %v411, 2
    %v413 = vadd.f32 %v411, %v412
    %v414 = vrot.slane %v413, 1
    %v415 = vadd.f32 %v413, %v414
    %v416 = vadd.f32 %v351, %v353
    %v417 = vadd.f32 %v416, %v356
    %v418 = vadd.f32 %v417, %v358
    %v419 = vadd.f32 %v418, %v361
    %v420 = vadd.f32 %v419, %v363
    %v421 = vadd.f32 %v420, %v366
    %v422 = vadd.f32 %v421, %v368
    %v423 = vrot.slane %v422, 4
    %v424 = vadd.f32 %v422, %v423
    %v425 = vrot.slane %v424, 2
    %v426 = vadd.f32 %v424, %v425
    %v427 = vrot.slane %v426, 1
    %v428 = vadd.f32 %v426, %v427
    %v429 = vadd.f32 %v380, %v382
    %v430 = vadd.f32 %v429, %v385
    %v431 = vadd.f32 %v430, %v387
    %v432 = vadd.f32 %v431, %v390
    %v433 = vadd.f32 %v432, %v392
    %v434 = vadd.f32 %v433, %v395
    %v435 = vadd.f32 %v434, %v397
    %v436 = vrot.slane %v435, 4
    %v437 = vadd.f32 %v435, %v436
    %v438 = vrot.slane %v437, 2
    %v439 = vadd.f32 %v437, %v438
    %v440 = vrot.slane %v439, 1
    %v441 = vadd.f32 %v439, %v440
    %v442 = vmul.f32 %v322, %v322
    %v443 = vmul.f32 %v351, %v351
    %v444 = vmul.f32 %v380, %v380
    %v445 = vmul.f32 %v324, %v324
    %v446 = vmul.f32 %v353, %v353
    %v447 = vmul.f32 %v382, %v382
    %v448 = vmul.f32 %v327, %v327
    %v449 = vmul.f32 %v356, %v356
    %v450 = vmul.f32 %v385, %v385
    %v451 = vmul.f32 %v329, %v329
    %v452 = vmul.f32 %v358, %v358
    %v453 = vmul.f32 %v387, %v387
    %v454 = vmul.f32 %v332, %v332
    %v455 = vmul.f32 %v361, %v361
    %v456 = vmul.f32 %v390, %v390
    %v457 = vmul.f32 %v334, %v334
    %v458 = vmul.f32 %v363, %v363
    %v459 = vmul.f32 %v392, %v392
    %v460 = vmul.f32 %v337, %v337
    %v461 = vmul.f32 %v366, %v366
    %v462 = vmul.f32 %v395, %v395
    %v463 = vmul.f32 %v339, %v339
    %v464 = vmul.f32 %v368, %v368
    %v465 = vmul.f32 %v397, %v397
    %v466 = vadd.f32 %v442, %v445
    %v467 = vadd.f32 %v466, %v448
    %v468 = vadd.f32 %v467, %v451
    %v469 = vadd.f32 %v468, %v454
    %v470 = vadd.f32 %v469, %v457
    %v471 = vadd.f32 %v470, %v460
    %v472 = vadd.f32 %v471, %v463
    %v473 = vrot.slane %v472, 4
    %v474 = vadd.f32 %v472, %v473
    %v475 = vrot.slane %v474, 2
    %v476 = vadd.f32 %v474, %v475
    %v477 = vrot.slane %v476, 1
    %v478 = vadd.f32 %v476, %v477
    %v479 = vadd.f32 %v443, %v446
    %v480 = vadd.f32 %v479, %v449
    %v481 = vadd.f32 %v480, %v452
    %v482 = vadd.f32 %v481, %v455
    %v483 = vadd.f32 %v482, %v458
    %v484 = vadd.f32 %v483, %v461
    %v485 = vadd.f32 %v484, %v464
    %v486 = vrot.slane %v485, 4
    %v487 = vadd.f32 %v485, %v486
    %v488 = vrot.slane %v487, 2
    %v489 = vadd.f32 %v487, %v488
    %v490 = vrot.slane %v489, 1
    %v491 = vadd.f32 %v489, %v490
    %v492 = vadd.f32 %v444, %v447
    %v493 = vadd.f32 %v492, %v450
    %v494 = vadd.f32 %v493, %v453
    %v495 = vadd.f32 %v494, %v456
    %v496 = vadd.f32 %v495, %v459
    %v497 = vadd.f32 %v496, %v462
    %v498 = vadd.f32 %v497, %v465
    %v499 = vrot.slane %v498, 4
    %v500 = vadd.f32 %v498, %v499
    %v501 = vrot.slane %v500, 2
    %v502 = vadd.f32 %v500, %v501
    %v503 = vrot.slane %v502, 1
    %v504 = vadd.f32 %v502, %v503
    %v505 = vmul.f32 %v415, 0.015625
    %v506 = vmul.f32 %v428, 0.015625
    %v507 = vmul.f32 %v441, 0.015625
    %v508 = vmul.f32 %v478, 0.015625
    %v509 = vmul.f32 %v491, 0.015625
    %v510 = vmul.f32 %v504, 0.015625
    %v511 = vmul.f32 %v505, %v505
    %v512 = vmul.f32 %v506, %v506
    %v513 = vmul.f32 %v507, %v507
    %v514 = vsub.f32 %v508, %v511
    %v515 = vsub.f32 %v509, %v512
    %v516 = vsub.f32 %v510, %v513
    %v517 = vmax.f32 %v514, 0.0
    %v518 = vmax.f32 %v515, 0.0
    %v519 = vmax.f32 %v516, 0.0
    %v520 = vadd.f32 %v517, 1e-05
    %v521 = vadd.f32 %v518, 1e-05
    %v522 = vadd.f32 %v519, 1e-05
    %v523 = vrsqrt.pop %v520
    %v524 = vmul.f32 %v523, %v520
    %v525 = vmul.f32 %v524, %v523
    %v526 = vmul.f32 0.5, %v525
    %v527 = vsub.f32 1.5, %v526
    %v528 = vmul.f32 %v523, %v527
    %vm529 = vweird.f32 %v520
    %vm530 = vweird.f32 %v523
    %vm531 = vmor %vm529, %vm530
    %v532 = vsel %vm531, %v523, %v528
    %v533 = vrsqrt.pop %v521
    %v534 = vmul.f32 %v533, %v521
    %v535 = vmul.f32 %v534, %v533
    %v536 = vmul.f32 0.5, %v535
    %v537 = vsub.f32 1.5, %v536
    %v538 = vmul.f32 %v533, %v537
    %vm539 = vweird.f32 %v521
    %vm540 = vweird.f32 %v533
    %vm541 = vmor %vm539, %vm540
    %v542 = vsel %vm541, %v533, %v538
    %v543 = vrsqrt.pop %v522
    %v544 = vmul.f32 %v543, %v522
    %v545 = vmul.f32 %v544, %v543
    %v546 = vmul.f32 0.5, %v545
    %v547 = vsub.f32 1.5, %v546
    %v548 = vmul.f32 %v543, %v547
    %vm549 = vweird.f32 %v522
    %vm550 = vweird.f32 %v543
    %vm551 = vmor %vm549, %vm550
    %v552 = vsel %vm551, %v543, %v548
    %v556 = vrot.slane %v542, 7
    %v557 = vrot.slane %v552, 6
    %vm558 = vcmask 1040384
    %v559 = vsel %vm558, %v532, %v556
    %vm560 = vcmask 1041408
    %v561 = vsel %vm560, %v559, %v557
    %v563 = vmul.f32 %v400, %v561
    %v564 = vsub.f32 %v322, %v505
    %v565 = vsub.f32 %v351, %v506
    %v566 = vsub.f32 %v380, %v507
    %v567 = vsub.f32 %v324, %v505
    %v568 = vsub.f32 %v353, %v506
    %v569 = vsub.f32 %v382, %v507
    %v570 = vsub.f32 %v327, %v505
    %v571 = vsub.f32 %v356, %v506
    %v572 = vsub.f32 %v385, %v507
    %v573 = vsub.f32 %v329, %v505
    %v574 = vsub.f32 %v358, %v506
    %v575 = vsub.f32 %v387, %v507
    %v576 = vsub.f32 %v332, %v505
    %v577 = vsub.f32 %v361, %v506
    %v578 = vsub.f32 %v390, %v507
    %v579 = vsub.f32 %v334, %v505
    %v580 = vsub.f32 %v363, %v506
    %v581 = vsub.f32 %v392, %v507
    %v582 = vsub.f32 %v337, %v505
    %v583 = vsub.f32 %v366, %v506
    %v584 = vsub.f32 %v395, %v507
    %v585 = vsub.f32 %v339, %v505
    %v586 = vsub.f32 %v368, %v506
    %v587 = vsub.f32 %v397, %v507
    %v589 = vperm.slane %v563, 0
    %v590 = vperm.slane %v563, 1
    %v591 = vperm.slane %v563, 2
    %v595 = vmul.f32 %v564, %v589
    %v596 = vmul.f32 %v565, %v590
    %v597 = vmul.f32 %v566, %v591
    %v598 = vmul.f32 %v567, %v589
    %v599 = vmul.f32 %v568, %v590
    %v600 = vmul.f32 %v569, %v591
    %v601 = vmul.f32 %v570, %v589
    %v602 = vmul.f32 %v571, %v590
    %v603 = vmul.f32 %v572, %v591
    %v604 = vmul.f32 %v573, %v589
    %v605 = vmul.f32 %v574, %v590
    %v606 = vmul.f32 %v575, %v591
    %v607 = vmul.f32 %v576, %v589
    %v608 = vmul.f32 %v577, %v590
    %v609 = vmul.f32 %v578, %v591
    %v610 = vmul.f32 %v579, %v589
    %v611 = vmul.f32 %v580, %v590
    %v612 = vmul.f32 %v581, %v591
    %v613 = vmul.f32 %v582, %v589
    %v614 = vmul.f32 %v583, %v590
    %v615 = vmul.f32 %v584, %v591
    %v616 = vmul.f32 %v585, %v589
    %v617 = vmul.f32 %v586, %v590
    %v618 = vmul.f32 %v587, %v591
    %v620 = vperm.slane %v402, 0
    %v621 = vperm.slane %v402, 1
    %v622 = vperm.slane %v402, 2
    %v626 = vadd.f32 %v595, %v620
    %v627 = vadd.f32 %v596, %v621
    %v628 = vadd.f32 %v597, %v622
    %v629 = vadd.f32 %v598, %v620
    %v630 = vadd.f32 %v599, %v621
    %v631 = vadd.f32 %v600, %v622
    %v632 = vadd.f32 %v601, %v620
    %v633 = vadd.f32 %v602, %v621
    %v634 = vadd.f32 %v603, %v622
    %v635 = vadd.f32 %v604, %v620
    %v636 = vadd.f32 %v605, %v621
    %v637 = vadd.f32 %v606, %v622
    %v638 = vadd.f32 %v607, %v620
    %v639 = vadd.f32 %v608, %v621
    %v640 = vadd.f32 %v609, %v622
    %v641 = vadd.f32 %v610, %v620
    %v642 = vadd.f32 %v611, %v621
    %v643 = vadd.f32 %v612, %v622
    %v644 = vadd.f32 %v613, %v620
    %v645 = vadd.f32 %v614, %v621
    %v646 = vadd.f32 %v615, %v622
    %v647 = vadd.f32 %v616, %v620
    %v648 = vadd.f32 %v617, %v621
    %v649 = vadd.f32 %v618, %v622
    %v650 = vmax.f32 %v626, 0.0
    %v651 = vmax.f32 %v627, 0.0
    %v652 = vmax.f32 %v628, 0.0
    %v653 = vmax.f32 %v629, 0.0
    %v654 = vmax.f32 %v630, 0.0
    %v655 = vmax.f32 %v631, 0.0
    %v656 = vmax.f32 %v632, 0.0
    %v657 = vmax.f32 %v633, 0.0
    %v658 = vmax.f32 %v634, 0.0
    %v659 = vmax.f32 %v635, 0.0
    %v660 = vmax.f32 %v636, 0.0
    %v661 = vmax.f32 %v637, 0.0
    %v662 = vmax.f32 %v638, 0.0
    %v663 = vmax.f32 %v639, 0.0
    %v664 = vmax.f32 %v640, 0.0
    %v665 = vmax.f32 %v641, 0.0
    %v666 = vmax.f32 %v642, 0.0
    %v667 = vmax.f32 %v643, 0.0
    %v668 = vmax.f32 %v644, 0.0
    %v669 = vmax.f32 %v645, 0.0
    %v670 = vmax.f32 %v646, 0.0
    %v671 = vmax.f32 %v647, 0.0
    %v672 = vmax.f32 %v648, 0.0
    %v673 = vmax.f32 %v649, 0.0
    %v674 = vpack.c.bf16 %v653, %v650
    %v675 = vpack.c.bf16 %v654, %v651
    %v676 = vpack.c.bf16 %v655, %v652
    %v677 = vpack.c.bf16 %v659, %v656
    %v678 = vpack.c.bf16 %v660, %v657
    %v679 = vpack.c.bf16 %v661, %v658
    %v680 = vpack.c.bf16 %v665, %v662
    %v681 = vpack.c.bf16 %v666, %v663
    %v682 = vpack.c.bf16 %v667, %v664
    %v683 = vpack.c.bf16 %v671, %v668
    %v684 = vpack.c.bf16 %v672, %v669
    %v685 = vpack.c.bf16 %v673, %v670
    %v686 = vld [vmem:[#allocation2] sm:$0xff]
    %v687 = vld [vmem:[#allocation2 + $0x8] sm:$0xf]
    %v688 = vld [vmem:[#allocation2 + $0xc] sm:$0xff]
    %v689 = vld [vmem:[#allocation2 + $0x14] sm:$0xf]
    %v690 = vld [vmem:[#allocation2 + $0x18] sm:$0xff]
    %v691 = vld [vmem:[#allocation2 + $0x20] sm:$0xf]
    %v692 = vld [vmem:[#allocation2 + $0x24] sm:$0xff]
    %v693 = vld [vmem:[#allocation2 + $0x2c] sm:$0xf]
    %v694 = vld [vmem:[#allocation2 + $0x30] sm:$0xff]
    %v695 = vld [vmem:[#allocation2 + $0x38] sm:$0xf]
    %v696 = vld [vmem:[#allocation2 + $0x3c] sm:$0xff]
    %v697 = vld [vmem:[#allocation2 + $0x44] sm:$0xf]
    %v698 = vld [vmem:[#allocation2 + $0x48] sm:$0xff]
    %v699 = vld [vmem:[#allocation2 + $0x50] sm:$0xf]
    %v700 = vld [vmem:[#allocation2 + $0x54] sm:$0xff]
    %v701 = vld [vmem:[#allocation2 + $0x5c] sm:$0xf]
    %v702 = vld [vmem:[#allocation2 + $0x60] sm:$0xff]
    %v703 = vld [vmem:[#allocation2 + $0x68] sm:$0xf]
    %v704 = vld [vmem:[#allocation2 + $0x6c] sm:$0xff]
    %v705 = vld [vmem:[#allocation2 + $0x74] sm:$0xf]
    %v706 = vld [vmem:[#allocation2 + $0x78] sm:$0xff]
    %v707 = vld [vmem:[#allocation2 + $0x80] sm:$0xf]
    %v708 = vld [vmem:[#allocation2 + $0x84] sm:$0xff]
    %v709 = vld [vmem:[#allocation2 + $0x8c] sm:$0xf]
    %v710 = vld [vmem:[#allocation2 + $0x90] sm:$0xff]
    %v711 = vld [vmem:[#allocation2 + $0x98] sm:$0xf]
    %v712 = vld [vmem:[#allocation2 + $0x9c] sm:$0xff]
    %v713 = vld [vmem:[#allocation2 + $0xa4] sm:$0xf]
    %v714 = vld [vmem:[#allocation2 + $0xa8] sm:$0xff]
    %v715 = vld [vmem:[#allocation2 + $0xb0] sm:$0xf]
    %v716 = vld [vmem:[#allocation2 + $0xb4] sm:$0xff]
    %v717 = vld [vmem:[#allocation2 + $0xbc] sm:$0xf]
    %v718 = vld [vmem:[#allocation2 + $0xc0] sm:$0xff]
    %v719 = vld [vmem:[#allocation2 + $0xc8] sm:$0xf]
    %v720 = vld [vmem:[#allocation2 + $0xcc] sm:$0xff]
    %v721 = vld [vmem:[#allocation2 + $0xd4] sm:$0xf]
    %v722 = vld [vmem:[#allocation2 + $0xd8] sm:$0xff]
    %v723 = vld [vmem:[#allocation2 + $0xe0] sm:$0xf]
    %v724 = vld [vmem:[#allocation2 + $0xe4] sm:$0xff]
    %v725 = vld [vmem:[#allocation2 + $0xec] sm:$0xf]
    %v726 = vld [vmem:[#allocation2 + $0xf0] sm:$0xff]
    %v727 = vld [vmem:[#allocation2 + $0xf8] sm:$0xf]
    %v728 = vld [vmem:[#allocation2 + $0xfc] sm:$0xff]
    %v729 = vld [vmem:[#allocation2 + $0x104] sm:$0xf]
    %v730 = vld [vmem:[#allocation2 + $0x108] sm:$0xff]
    %v731 = vld [vmem:[#allocation2 + $0x110] sm:$0xf]
    %v732 = vld [vmem:[#allocation2 + $0x114] sm:$0xff]
    %v733 = vld [vmem:[#allocation2 + $0x11c] sm:$0xf]
    %v734 = vld [vmem:[#allocation2 + $0x120] sm:$0xff]
    %v735 = vld [vmem:[#allocation2 + $0x128] sm:$0xf]
    %v736 = vld [vmem:[#allocation2 + $0x12c] sm:$0xff]
    %v737 = vld [vmem:[#allocation2 + $0x134] sm:$0xf]
    %v738 = vld [vmem:[#allocation2 + $0x138] sm:$0xff]
    %v739 = vld [vmem:[#allocation2 + $0x140] sm:$0xf]
    %v740 = vld [vmem:[#allocation2 + $0x144] sm:$0xff]
    %v741 = vld [vmem:[#allocation2 + $0x14c] sm:$0xf]
    %v742 = vld [vmem:[#allocation2 + $0x150] sm:$0xff]
    %v743 = vld [vmem:[#allocation2 + $0x158] sm:$0xf]
    %v744 = vld [vmem:[#allocation2 + $0x15c] sm:$0xff]
    %v745 = vld [vmem:[#allocation2 + $0x164] sm:$0xf]
    %v746 = vld [vmem:[#allocation2 + $0x168] sm:$0xff]
    %v747 = vld [vmem:[#allocation2 + $0x170] sm:$0xf]
    %v748 = vld [vmem:[#allocation2 + $0x174] sm:$0xff]
    %v749 = vld [vmem:[#allocation2 + $0x17c] sm:$0xf]
    %v750 = vld [vmem:[#allocation2 + $0x180] sm:$0xff]
    %v751 = vld [vmem:[#allocation2 + $0x188] sm:$0xf]
    %v752 = vld [vmem:[#allocation2 + $0x18c] sm:$0xff]
    %v753 = vld [vmem:[#allocation2 + $0x194] sm:$0xf]
    %v754 = vld [vmem:[#allocation2 + $0x198] sm:$0xff]
    %v755 = vld [vmem:[#allocation2 + $0x1a0] sm:$0xf]
    %v756 = vld [vmem:[#allocation2 + $0x1a4] sm:$0xff]
    %v757 = vld [vmem:[#allocation2 + $0x1ac] sm:$0xf]
    %v758 = vld [vmem:[#allocation2 + $0x1b0] sm:$0xff]
    %v759 = vld [vmem:[#allocation2 + $0x1b8] sm:$0xf]
    %v760 = vld [vmem:[#allocation2 + $0x1bc] sm:$0xff]
    %v761 = vld [vmem:[#allocation2 + $0x1c4] sm:$0xf]
    %v762 = vld [vmem:[#allocation2 + $0x1c8] sm:$0xff]
    %v763 = vld [vmem:[#allocation2 + $0x1d0] sm:$0xf]
    %v764 = vld [vmem:[#allocation2 + $0x1d4] sm:$0xff]
    %v765 = vld [vmem:[#allocation2 + $0x1dc] sm:$0xf]
    %v766 = vld [vmem:[#allocation2 + $0x1e0] sm:$0xff]
    %v767 = vld [vmem:[#allocation2 + $0x1e8] sm:$0xf]
    %v768 = vld [vmem:[#allocation2 + $0x1ec] sm:$0xff]
    %v769 = vld [vmem:[#allocation2 + $0x1f4] sm:$0xf]
    %v770 = vld [vmem:[#allocation2 + $0x1f8] sm:$0xff]
    %v771 = vld [vmem:[#allocation2 + $0x200] sm:$0xf]
    %v772 = vld [vmem:[#allocation2 + $0x204] sm:$0xff]
    %v773 = vld [vmem:[#allocation2 + $0x20c] sm:$0xf]
    %v774 = vld [vmem:[#allocation2 + $0x210] sm:$0xff]
    %v775 = vld [vmem:[#allocation2 + $0x218] sm:$0xf]
    %v776 = vld [vmem:[#allocation2 + $0x21c] sm:$0xff]
    %v777 = vld [vmem:[#allocation2 + $0x224] sm:$0xf]
    %v778 = vld [vmem:[#allocation2 + $0x228] sm:$0xff]
    %v779 = vld [vmem:[#allocation2 + $0x230] sm:$0xf]
    %v780 = vld [vmem:[#allocation2 + $0x234] sm:$0xff]
    %v781 = vld [vmem:[#allocation2 + $0x23c] sm:$0xf]
    %v878 = vunpack.c.l.b16 %v686
    %v879 = vunpack.c.h.b16 %v686
    %v880 = vunpack.c.l.b16 %v687
    %v881 = vunpack.c.l.b16 %v688
    %v882 = vunpack.c.h.b16 %v688
    %v883 = vunpack.c.l.b16 %v689
    %v884 = vunpack.c.l.b16 %v690
    %v885 = vunpack.c.h.b16 %v690
    %v886 = vunpack.c.l.b16 %v691
    %v887 = vunpack.c.l.b16 %v692
    %v888 = vunpack.c.h.b16 %v692
    %v889 = vunpack.c.l.b16 %v693
    %v890 = vunpack.c.l.b16 %v694
    %v891 = vunpack.c.h.b16 %v694
    %v892 = vunpack.c.l.b16 %v695
    %v893 = vunpack.c.l.b16 %v696
    %v894 = vunpack.c.h.b16 %v696
    %v895 = vunpack.c.l.b16 %v697
    %v896 = vunpack.c.l.b16 %v698
    %v897 = vunpack.c.h.b16 %v698
    %v898 = vunpack.c.l.b16 %v699
    %v899 = vunpack.c.l.b16 %v700
    %v900 = vunpack.c.h.b16 %v700
    %v901 = vunpack.c.l.b16 %v701
    %v902 = vunpack.c.l.b16 %v702
    %v903 = vunpack.c.h.b16 %v702
    %v904 = vunpack.c.l.b16 %v703
    %v905 = vunpack.c.l.b16 %v704
    %v906 = vunpack.c.h.b16 %v704
    %v907 = vunpack.c.l.b16 %v705
    %v908 = vunpack.c.l.b16 %v706
    %v909 = vunpack.c.h.b16 %v706
    %v910 = vunpack.c.l.b16 %v707
    %v911 = vunpack.c.l.b16 %v708
    %v912 = vunpack.c.h.b16 %v708
    %v913 = vunpack.c.l.b16 %v709
    %v914 = vunpack.c.l.b16 %v710
    %v915 = vunpack.c.h.b16 %v710
    %v916 = vunpack.c.l.b16 %v711
    %v917 = vunpack.c.l.b16 %v712
    %v918 = vunpack.c.h.b16 %v712
    %v919 = vunpack.c.l.b16 %v713
    %v920 = vunpack.c.l.b16 %v714
    %v921 = vunpack.c.h.b16 %v714
    %v922 = vunpack.c.l.b16 %v715
    %v923 = vunpack.c.l.b16 %v716
    %v924 = vunpack.c.h.b16 %v716
    %v925 = vunpack.c.l.b16 %v717
    %v926 = vunpack.c.l.b16 %v718
    %v927 = vunpack.c.h.b16 %v718
    %v928 = vunpack.c.l.b16 %v719
    %v929 = vunpack.c.l.b16 %v720
    %v930 = vunpack.c.h.b16 %v720
    %v931 = vunpack.c.l.b16 %v721
    %v932 = vunpack.c.l.b16 %v722
    %v933 = vunpack.c.h.b16 %v722
    %v934 = vunpack.c.l.b16 %v723
    %v935 = vunpack.c.l.b16 %v724
    %v936 = vunpack.c.h.b16 %v724
    %v937 = vunpack.c.l.b16 %v725
    %v938 = vunpack.c.l.b16 %v726
    %v939 = vunpack.c.h.b16 %v726
    %v940 = vunpack.c.l.b16 %v727
    %v941 = vunpack.c.l.b16 %v728
    %v942 = vunpack.c.h.b16 %v728
    %v943 = vunpack.c.l.b16 %v729
    %v944 = vunpack.c.l.b16 %v730
    %v945 = vunpack.c.h.b16 %v730
    %v946 = vunpack.c.l.b16 %v731
    %v947 = vunpack.c.l.b16 %v732
    %v948 = vunpack.c.h.b16 %v732
    %v949 = vunpack.c.l.b16 %v733
    %v950 = vunpack.c.l.b16 %v734
    %v951 = vunpack.c.h.b16 %v734
    %v952 = vunpack.c.l.b16 %v735
    %v953 = vunpack.c.l.b16 %v736
    %v954 = vunpack.c.h.b16 %v736
    %v955 = vunpack.c.l.b16 %v737
    %v956 = vunpack.c.l.b16 %v738
    %v957 = vunpack.c.h.b16 %v738
    %v958 = vunpack.c.l.b16 %v739
    %v959 = vunpack.c.l.b16 %v740
    %v960 = vunpack.c.h.b16 %v740
    %v961 = vunpack.c.l.b16 %v741
    %v962 = vunpack.c.l.b16 %v742
    %v963 = vunpack.c.h.b16 %v742
    %v964 = vunpack.c.l.b16 %v743
    %v965 = vunpack.c.l.b16 %v744
    %v966 = vunpack.c.h.b16 %v744
    %v967 = vunpack.c.l.b16 %v745
    %v968 = vunpack.c.l.b16 %v746
    %v969 = vunpack.c.h.b16 %v746
    %v970 = vunpack.c.l.b16 %v747
    %v971 = vunpack.c.l.b16 %v748
    %v972 = vunpack.c.h.b16 %v748
    %v973 = vunpack.c.l.b16 %v749
    %v974 = vunpack.c.l.b16 %v750
    %v975 = vunpack.c.h.b16 %v750
    %v976 = vunpack.c.l.b16 %v751
    %v977 = vunpack.c.l.b16 %v752
    %v978 = vunpack.c.h.b16 %v752
    %v979 = vunpack.c.l.b16 %v753
    %v980 = vunpack.c.l.b16 %v754
    %v981 = vunpack.c.h.b16 %v754
    %v982 = vunpack.c.l.b16 %v755
    %v983 = vunpack.c.l.b16 %v756
    %v984 = vunpack.c.h.b16 %v756
    %v985 = vunpack.c.l.b16 %v757
    %v986 = vunpack.c.l.b16 %v758
    %v987 = vunpack.c.h.b16 %v758
    %v988 = vunpack.c.l.b16 %v759
    %v989 = vunpack.c.l.b16 %v760
    %v990 = vunpack.c.h.b16 %v760
    %v991 = vunpack.c.l.b16 %v761
    %v992 = vunpack.c.l.b16 %v762
    %v993 = vunpack.c.h.b16 %v762
    %v994 = vunpack.c.l.b16 %v763
    %v995 = vunpack.c.l.b16 %v764
    %v996 = vunpack.c.h.b16 %v764
    %v997 = vunpack.c.l.b16 %v765
    %v998 = vunpack.c.l.b16 %v766
    %v999 = vunpack.c.h.b16 %v766
    %v1000 = vunpack.c.l.b16 %v767
    %v1001 = vunpack.c.l.b16 %v768
    %v1002 = vunpack.c.h.b16 %v768
    %v1003 = vunpack.c.l.b16 %v769
    %v1004 = vunpack.c.l.b16 %v770
    %v1005 = vunpack.c.h.b16 %v770
    %v1006 = vunpack.c.l.b16 %v771
    %v1007 = vunpack.c.l.b16 %v772
    %v1008 = vunpack.c.h.b16 %v772
    %v1009 = vunpack.c.l.b16 %v773
    %v1010 = vunpack.c.l.b16 %v774
    %v1011 = vunpack.c.h.b16 %v774
    %v1012 = vunpack.c.l.b16 %v775
    %v1013 = vunpack.c.l.b16 %v776
    %v1014 = vunpack.c.h.b16 %v776
    %v1015 = vunpack.c.l.b16 %v777
    %v1016 = vunpack.c.l.b16 %v778
    %v1017 = vunpack.c.h.b16 %v778
    %v1018 = vunpack.c.l.b16 %v779
    %v1019 = vunpack.c.l.b16 %v780
    %v1020 = vunpack.c.h.b16 %v780
    %v1021 = vunpack.c.l.b16 %v781
    %v1022 = vpack.c.b16 %v881, %v878
    %v1023 = vpack.c.b16 %v882, %v879
    %v1024 = vpack.c.b16 %v883, %v880
    %v1025 = vpack.c.b16 %v887, %v884
    %v1026 = vpack.c.b16 %v888, %v885
    %v1027 = vpack.c.b16 %v889, %v886
    %v1028 = vpack.c.b16 %v893, %v890
    %v1029 = vpack.c.b16 %v894, %v891
    %v1030 = vpack.c.b16 %v895, %v892
    %v1031 = vpack.c.b16 %v899, %v896
    %v1032 = vpack.c.b16 %v900, %v897
    %v1033 = vpack.c.b16 %v901, %v898
    %v1034 = vpack.c.b16 %v905, %v902
    %v1035 = vpack.c.b16 %v906, %v903
    %v1036 = vpack.c.b16 %v907, %v904
    %v1037 = vpack.c.b16 %v911, %v908
    %v1038 = vpack.c.b16 %v912, %v909
    %v1039 = vpack.c.b16 %v913, %v910
    %v1040 = vpack.c.b16 %v917, %v914
    %v1041 = vpack.c.b16 %v918, %v915
    %v1042 = vpack.c.b16 %v919, %v916
    %v1043 = vpack.c.b16 %v923, %v920
    %v1044 = vpack.c.b16 %v924, %v921
    %v1045 = vpack.c.b16 %v925, %v922
    %v1046 = vpack.c.b16 %v929, %v926
    %v1047 = vpack.c.b16 %v930, %v927
    %v1048 = vpack.c.b16 %v931, %v928
    %v1049 = vpack.c.b16 %v935, %v932
    %v1050 = vpack.c.b16 %v936, %v933
    %v1051 = vpack.c.b16 %v937, %v934
    %v1052 = vpack.c.b16 %v941, %v938
    %v1053 = vpack.c.b16 %v942, %v939
    %v1054 = vpack.c.b16 %v943, %v940
    %v1055 = vpack.c.b16 %v947, %v944
    %v1056 = vpack.c.b16 %v948, %v945
    %v1057 = vpack.c.b16 %v949, %v946
    %v1058 = vpack.c.b16 %v953, %v950
    %v1059 = vpack.c.b16 %v954, %v951
    %v1060 = vpack.c.b16 %v955, %v952
    %v1061 = vpack.c.b16 %v959, %v956
    %v1062 = vpack.c.b16 %v960, %v957
    %v1063 = vpack.c.b16 %v961, %v958
    %v1064 = vpack.c.b16 %v965, %v962
    %v1065 = vpack.c.b16 %v966, %v963
    %v1066 = vpack.c.b16 %v967, %v964
    %v1067 = vpack.c.b16 %v971, %v968
    %v1068 = vpack.c.b16 %v972, %v969
    %v1069 = vpack.c.b16 %v973, %v970
    %v1070 = vpack.c.b16 %v977, %v974
    %v1071 = vpack.c.b16 %v978, %v975
    %v1072 = vpack.c.b16 %v979, %v976
    %v1073 = vpack.c.b16 %v983, %v980
    %v1074 = vpack.c.b16 %v984, %v981
    %v1075 = vpack.c.b16 %v985, %v982
    %v1076 = vpack.c.b16 %v989, %v986
    %v1077 = vpack.c.b16 %v990, %v987
    %v1078 = vpack.c.b16 %v991, %v988
    %v1079 = vpack.c.b16 %v995, %v992
    %v1080 = vpack.c.b16 %v996, %v993
    %v1081 = vpack.c.b16 %v997, %v994
    %v1082 = vpack.c.b16 %v1001, %v998
    %v1083 = vpack.c.b16 %v1002, %v999
    %v1084 = vpack.c.b16 %v1003, %v1000
    %v1085 = vpack.c.b16 %v1007, %v1004
    %v1086 = vpack.c.b16 %v1008, %v1005
    %v1087 = vpack.c.b16 %v1009, %v1006
    %v1088 = vpack.c.b16 %v1013, %v1010
    %v1089 = vpack.c.b16 %v1014, %v1011
    %v1090 = vpack.c.b16 %v1015, %v1012
    %v1091 = vpack.c.b16 %v1019, %v1016
    %v1092 = vpack.c.b16 %v1020, %v1017
    %v1093 = vpack.c.b16 %v1021, %v1018
    %1166 = vmatpush.bf16.msra.mxu0 %v1043
    %1167 = vmatpush.bf16.msra.mxu0 %v1040
    %1168 = vmatpush.bf16.msra.mxu0 %v1037
    %1169 = vmatpush.bf16.msra.mxu0 %v1034
    %1170 = vmatpush.bf16.msra.mxu0 %v1031
    %1171 = vmatpush.bf16.msra.mxu0 %v1028
    %1172 = vmatpush.bf16.msra.mxu0 %v1025
    %1173 = vmatpush.bf16.msra.mxu0 %v1022
    %1174 = vmatmul.bf16.gmra.mxu0 %v674
    %v1175 = vpop.f32.mrf.mxu0
    %v1176 = vadd.f32 0.0, %v1175
    %v1177 = vpop.f32.mrf.mxu0
    %v1178 = vadd.f32 0.0, %v1177
    %1179 = vmatmul.bf16.gmra.mxu0 %v677
    %v1180 = vpop.f32.mrf.mxu0
    %v1181 = vadd.f32 0.0, %v1180
    %v1182 = vpop.f32.mrf.mxu0
    %v1183 = vadd.f32 0.0, %v1182
    %1184 = vmatmul.bf16.gmra.mxu0 %v680
    %v1185 = vpop.f32.mrf.mxu0
    %v1186 = vadd.f32 0.0, %v1185
    %v1187 = vpop.f32.mrf.mxu0
    %v1188 = vadd.f32 0.0, %v1187
    %1189 = vmatmul.bf16.gmra.mxu0 %v683
    %v1190 = vpop.f32.mrf.mxu0
    %v1191 = vadd.f32 0.0, %v1190
    %v1192 = vpop.f32.mrf.mxu0
    %v1193 = vadd.f32 0.0, %v1192
    %1194 = vdwg.mxu0
    %1195 = vmatpush.bf16.msra.mxu0 %v1067
    %1196 = vmatpush.bf16.msra.mxu0 %v1064
    %1197 = vmatpush.bf16.msra.mxu0 %v1061
    %1198 = vmatpush.bf16.msra.mxu0 %v1058
    %1199 = vmatpush.bf16.msra.mxu0 %v1055
    %1200 = vmatpush.bf16.msra.mxu0 %v1052
    %1201 = vmatpush.bf16.msra.mxu0 %v1049
    %1202 = vmatpush.bf16.msra.mxu0 %v1046
    %1203 = vmatmul.bf16.gmra.mxu0 %v675
    %v1204 = vpop.f32.mrf.mxu0
    %v1205 = vadd.f32 %v1176, %v1204
    %v1206 = vpop.f32.mrf.mxu0
    %v1207 = vadd.f32 %v1178, %v1206
    %1208 = vmatmul.bf16.gmra.mxu0 %v678
    %v1209 = vpop.f32.mrf.mxu0
    %v1210 = vadd.f32 %v1181, %v1209
    %v1211 = vpop.f32.mrf.mxu0
    %v1212 = vadd.f32 %v1183, %v1211
    %1213 = vmatmul.bf16.gmra.mxu0 %v681
    %v1214 = vpop.f32.mrf.mxu0
    %v1215 = vadd.f32 %v1186, %v1214
    %v1216 = vpop.f32.mrf.mxu0
    %v1217 = vadd.f32 %v1188, %v1216
    %1218 = vmatmul.bf16.gmra.mxu0 %v684
    %v1219 = vpop.f32.mrf.mxu0
    %v1220 = vadd.f32 %v1191, %v1219
    %v1221 = vpop.f32.mrf.mxu0
    %v1222 = vadd.f32 %v1193, %v1221
    %1223 = vdwg.mxu0
    %1224 = vmatpush.bf16.msra.mxu0 %v1091
    %1225 = vmatpush.bf16.msra.mxu0 %v1088
    %1226 = vmatpush.bf16.msra.mxu0 %v1085
    %1227 = vmatpush.bf16.msra.mxu0 %v1082
    %1228 = vmatpush.bf16.msra.mxu0 %v1079
    %1229 = vmatpush.bf16.msra.mxu0 %v1076
    %1230 = vmatpush.bf16.msra.mxu0 %v1073
    %1231 = vmatpush.bf16.msra.mxu0 %v1070
    %1232 = vmatmul.bf16.gmra.mxu0 %v676
    %v1233 = vpop.f32.mrf.mxu0
    %v1234 = vadd.f32 %v1205, %v1233
    %v1235 = vpop.f32.mrf.mxu0
    %v1236 = vadd.f32 %v1207, %v1235
    %1237 = vmatmul.bf16.gmra.mxu0 %v679
    %v1238 = vpop.f32.mrf.mxu0
    %v1239 = vadd.f32 %v1210, %v1238
    %v1240 = vpop.f32.mrf.mxu0
    %v1241 = vadd.f32 %v1212, %v1240
    %1242 = vmatmul.bf16.gmra.mxu0 %v682
    %v1243 = vpop.f32.mrf.mxu0
    %v1244 = vadd.f32 %v1215, %v1243
    %v1245 = vpop.f32.mrf.mxu0
    %v1246 = vadd.f32 %v1217, %v1245
    %1247 = vmatmul.bf16.gmra.mxu0 %v685
    %v1248 = vpop.f32.mrf.mxu0
    %v1249 = vadd.f32 %v1220, %v1248
    %v1250 = vpop.f32.mrf.mxu0
    %v1251 = vadd.f32 %v1222, %v1250
    %1252 = vdwg.mxu0
    %1253 = vmatpush.bf16.msra.mxu0 %v1044
    %1254 = vmatpush.bf16.msra.mxu0 %v1041
    %1255 = vmatpush.bf16.msra.mxu0 %v1038
    %1256 = vmatpush.bf16.msra.mxu0 %v1035
    %1257 = vmatpush.bf16.msra.mxu0 %v1032
    %1258 = vmatpush.bf16.msra.mxu0 %v1029
    %1259 = vmatpush.bf16.msra.mxu0 %v1026
    %1260 = vmatpush.bf16.msra.mxu0 %v1023
    %1261 = vmatmul.bf16.gmra.mxu0 %v674
    %v1262 = vpop.f32.mrf.mxu0
    %v1263 = vadd.f32 0.0, %v1262
    %v1264 = vpop.f32.mrf.mxu0
    %v1265 = vadd.f32 0.0, %v1264
    %1266 = vmatmul.bf16.gmra.mxu0 %v677
    %v1267 = vpop.f32.mrf.mxu0
    %v1268 = vadd.f32 0.0, %v1267
    %v1269 = vpop.f32.mrf.mxu0
    %v1270 = vadd.f32 0.0, %v1269
    %1271 = vmatmul.bf16.gmra.mxu0 %v680
    %v1272 = vpop.f32.mrf.mxu0
    %v1273 = vadd.f32 0.0, %v1272
    %v1274 = vpop.f32.mrf.mxu0
    %v1275 = vadd.f32 0.0, %v1274
    %1276 = vmatmul.bf16.gmra.mxu0 %v683
    %v1277 = vpop.f32.mrf.mxu0
    %v1278 = vadd.f32 0.0, %v1277
    %v1279 = vpop.f32.mrf.mxu0
    %v1280 = vadd.f32 0.0, %v1279
    %1281 = vdwg.mxu0
    %1282 = vmatpush.bf16.msra.mxu0 %v1068
    %1283 = vmatpush.bf16.msra.mxu0 %v1065
    %1284 = vmatpush.bf16.msra.mxu0 %v1062
    %1285 = vmatpush.bf16.msra.mxu0 %v1059
    %1286 = vmatpush.bf16.msra.mxu0 %v1056
    %1287 = vmatpush.bf16.msra.mxu0 %v1053
    %1288 = vmatpush.bf16.msra.mxu0 %v1050
    %1289 = vmatpush.bf16.msra.mxu0 %v1047
    %1290 = vmatmul.bf16.gmra.mxu0 %v675
    %v1291 = vpop.f32.mrf.mxu0
    %v1292 = vadd.f32 %v1263, %v1291
    %v1293 = vpop.f32.mrf.mxu0
    %v1294 = vadd.f32 %v1265, %v1293
    %1295 = vmatmul.bf16.gmra.mxu0 %v678
    %v1296 = vpop.f32.mrf.mxu0
    %v1297 = vadd.f32 %v1268, %v1296
    %v1298 = vpop.f32.mrf.mxu0
    %v1299 = vadd.f32 %v1270, %v1298
    %1300 = vmatmul.bf16.gmra.mxu0 %v681
    %v1301 = vpop.f32.mrf.mxu0
    %v1302 = vadd.f32 %v1273, %v1301
    %v1303 = vpop.f32.mrf.mxu0
    %v1304 = vadd.f32 %v1275, %v1303
    %1305 = vmatmul.bf16.gmra.mxu0 %v684
    %v1306 = vpop.f32.mrf.mxu0
    %v1307 = vadd.f32 %v1278, %v1306
    %v1308 = vpop.f32.mrf.mxu0
    %v1309 = vadd.f32 %v1280, %v1308
    %1310 = vdwg.mxu0
    %1311 = vmatpush.bf16.msra.mxu0 %v1092
    %1312 = vmatpush.bf16.msra.mxu0 %v1089
    %1313 = vmatpush.bf16.msra.mxu0 %v1086
    %1314 = vmatpush.bf16.msra.mxu0 %v1083
    %1315 = vmatpush.bf16.msra.mxu0 %v1080
    %1316 = vmatpush.bf16.msra.mxu0 %v1077
    %1317 = vmatpush.bf16.msra.mxu0 %v1074
    %1318 = vmatpush.bf16.msra.mxu0 %v1071
    %1319 = vmatmul.bf16.gmra.mxu0 %v676
    %v1320 = vpop.f32.mrf.mxu0
    %v1321 = vadd.f32 %v1292, %v1320
    %v1322 = vpop.f32.mrf.mxu0
    %v1323 = vadd.f32 %v1294, %v1322
    %1324 = vmatmul.bf16.gmra.mxu0 %v679
    %v1325 = vpop.f32.mrf.mxu0
    %v1326 = vadd.f32 %v1297, %v1325
    %v1327 = vpop.f32.mrf.mxu0
    %v1328 = vadd.f32 %v1299, %v1327
    %1329 = vmatmul.bf16.gmra.mxu0 %v682
    %v1330 = vpop.f32.mrf.mxu0
    %v1331 = vadd.f32 %v1302, %v1330
    %v1332 = vpop.f32.mrf.mxu0
    %v1333 = vadd.f32 %v1304, %v1332
    %1334 = vmatmul.bf16.gmra.mxu0 %v685
    %v1335 = vpop.f32.mrf.mxu0
    %v1336 = vadd.f32 %v1307, %v1335
    %v1337 = vpop.f32.mrf.mxu0
    %v1338 = vadd.f32 %v1309, %v1337
    %1339 = vdwg.mxu0
    %1340 = vmatpush.bf16.msra.mxu0 %v1045
    %1341 = vmatpush.bf16.msra.mxu0 %v1042
    %1342 = vmatpush.bf16.msra.mxu0 %v1039
    %1343 = vmatpush.bf16.msra.mxu0 %v1036
    %1344 = vmatpush.bf16.msra.mxu0 %v1033
    %1345 = vmatpush.bf16.msra.mxu0 %v1030
    %1346 = vmatpush.bf16.msra.mxu0 %v1027
    %1347 = vmatpush.bf16.msra.mxu0 %v1024
    %1348 = vmatmul.bf16.gmra.mxu0 %v674
    %v1349 = vpop.f32.mrf.mxu0
    %v1350 = vadd.f32 0.0, %v1349
    %v1351 = vpop.f32.mrf.mxu0
    %v1352 = vadd.f32 0.0, %v1351
    %1353 = vmatmul.bf16.gmra.mxu0 %v677
    %v1354 = vpop.f32.mrf.mxu0
    %v1355 = vadd.f32 0.0, %v1354
    %v1356 = vpop.f32.mrf.mxu0
    %v1357 = vadd.f32 0.0, %v1356
    %1358 = vmatmul.bf16.gmra.mxu0 %v680
    %v1359 = vpop.f32.mrf.mxu0
    %v1360 = vadd.f32 0.0, %v1359
    %v1361 = vpop.f32.mrf.mxu0
    %v1362 = vadd.f32 0.0, %v1361
    %1363 = vmatmul.bf16.gmra.mxu0 %v683
    %v1364 = vpop.f32.mrf.mxu0
    %v1365 = vadd.f32 0.0, %v1364
    %v1366 = vpop.f32.mrf.mxu0
    %v1367 = vadd.f32 0.0, %v1366
    %1368 = vdwg.mxu0
    %1369 = vmatpush.bf16.msra.mxu0 %v1069
    %1370 = vmatpush.bf16.msra.mxu0 %v1066
    %1371 = vmatpush.bf16.msra.mxu0 %v1063
    %1372 = vmatpush.bf16.msra.mxu0 %v1060
    %1373 = vmatpush.bf16.msra.mxu0 %v1057
    %1374 = vmatpush.bf16.msra.mxu0 %v1054
    %1375 = vmatpush.bf16.msra.mxu0 %v1051
    %1376 = vmatpush.bf16.msra.mxu0 %v1048
    %1377 = vmatmul.bf16.gmra.mxu0 %v675
    %v1378 = vpop.f32.mrf.mxu0
    %v1379 = vadd.f32 %v1350, %v1378
    %v1380 = vpop.f32.mrf.mxu0
    %v1381 = vadd.f32 %v1352, %v1380
    %1382 = vmatmul.bf16.gmra.mxu0 %v678
    %v1383 = vpop.f32.mrf.mxu0
    %v1384 = vadd.f32 %v1355, %v1383
    %v1385 = vpop.f32.mrf.mxu0
    %v1386 = vadd.f32 %v1357, %v1385
    %1387 = vmatmul.bf16.gmra.mxu0 %v681
    %v1388 = vpop.f32.mrf.mxu0
    %v1389 = vadd.f32 %v1360, %v1388
    %v1390 = vpop.f32.mrf.mxu0
    %v1391 = vadd.f32 %v1362, %v1390
    %1392 = vmatmul.bf16.gmra.mxu0 %v684
    %v1393 = vpop.f32.mrf.mxu0
    %v1394 = vadd.f32 %v1365, %v1393
    %v1395 = vpop.f32.mrf.mxu0
    %v1396 = vadd.f32 %v1367, %v1395
    %1397 = vdwg.mxu0
    %1398 = vmatpush.bf16.msra.mxu0 %v1093
    %1399 = vmatpush.bf16.msra.mxu0 %v1090
    %1400 = vmatpush.bf16.msra.mxu0 %v1087
    %1401 = vmatpush.bf16.msra.mxu0 %v1084
    %1402 = vmatpush.bf16.msra.mxu0 %v1081
    %1403 = vmatpush.bf16.msra.mxu0 %v1078
    %1404 = vmatpush.bf16.msra.mxu0 %v1075
    %1405 = vmatpush.bf16.msra.mxu0 %v1072
    %1406 = vmatmul.bf16.gmra.mxu0 %v676
    %v1407 = vpop.f32.mrf.mxu0
    %v1408 = vadd.f32 %v1379, %v1407
    %v1409 = vpop.f32.mrf.mxu0
    %v1410 = vadd.f32 %v1381, %v1409
    %1411 = vmatmul.bf16.gmra.mxu0 %v679
    %v1412 = vpop.f32.mrf.mxu0
    %v1413 = vadd.f32 %v1384, %v1412
    %v1414 = vpop.f32.mrf.mxu0
    %v1415 = vadd.f32 %v1386, %v1414
    %1416 = vmatmul.bf16.gmra.mxu0 %v682
    %v1417 = vpop.f32.mrf.mxu0
    %v1418 = vadd.f32 %v1389, %v1417
    %v1419 = vpop.f32.mrf.mxu0
    %v1420 = vadd.f32 %v1391, %v1419
    %1421 = vmatmul.bf16.gmra.mxu0 %v685
    %v1422 = vpop.f32.mrf.mxu0
    %v1423 = vadd.f32 %v1394, %v1422
    %v1424 = vpop.f32.mrf.mxu0
    %v1425 = vadd.f32 %v1396, %v1424
    %1426 = vdwg.mxu0
    %s1427 = scalar_lea.vmem %s4, 4
    %v1428 = vld [vmem:[%s1427] ss:$8 sm:$0x7]
    %s1429 = scalar_lea.vmem %s4, 5
    %v1430 = vld [vmem:[%s1429] ss:$8 sm:$0x7]
    %v1431 = vadd.f32 %v1234, %v1236
    %v1432 = vadd.f32 %v1431, %v1239
    %v1433 = vadd.f32 %v1432, %v1241
    %v1434 = vadd.f32 %v1433, %v1244
    %v1435 = vadd.f32 %v1434, %v1246
    %v1436 = vadd.f32 %v1435, %v1249
    %v1437 = vadd.f32 %v1436, %v1251
    %v1438 = vrot.slane %v1437, 4
    %v1439 = vadd.f32 %v1437, %v1438
    %v1440 = vrot.slane %v1439, 2
    %v1441 = vadd.f32 %v1439, %v1440
    %v1442 = vrot.slane %v1441, 1
    %v1443 = vadd.f32 %v1441, %v1442
    %v1444 = vadd.f32 %v1321, %v1323
    %v1445 = vadd.f32 %v1444, %v1326
    %v1446 = vadd.f32 %v1445, %v1328
    %v1447 = vadd.f32 %v1446, %v1331
    %v1448 = vadd.f32 %v1447, %v1333
    %v1449 = vadd.f32 %v1448, %v1336
    %v1450 = vadd.f32 %v1449, %v1338
    %v1451 = vrot.slane %v1450, 4
    %v1452 = vadd.f32 %v1450, %v1451
    %v1453 = vrot.slane %v1452, 2
    %v1454 = vadd.f32 %v1452, %v1453
    %v1455 = vrot.slane %v1454, 1
    %v1456 = vadd.f32 %v1454, %v1455
    %v1457 = vadd.f32 %v1408, %v1410
    %v1458 = vadd.f32 %v1457, %v1413
    %v1459 = vadd.f32 %v1458, %v1415
    %v1460 = vadd.f32 %v1459, %v1418
    %v1461 = vadd.f32 %v1460, %v1420
    %v1462 = vadd.f32 %v1461, %v1423
    %v1463 = vadd.f32 %v1462, %v1425
    %v1464 = vrot.slane %v1463, 4
    %v1465 = vadd.f32 %v1463, %v1464
    %v1466 = vrot.slane %v1465, 2
    %v1467 = vadd.f32 %v1465, %v1466
    %v1468 = vrot.slane %v1467, 1
    %v1469 = vadd.f32 %v1467, %v1468
    %v1470 = vmul.f32 %v1234, %v1234
    %v1471 = vmul.f32 %v1321, %v1321
    %v1472 = vmul.f32 %v1408, %v1408
    %v1473 = vmul.f32 %v1236, %v1236
    %v1474 = vmul.f32 %v1323, %v1323
    %v1475 = vmul.f32 %v1410, %v1410
    %v1476 = vmul.f32 %v1239, %v1239
    %v1477 = vmul.f32 %v1326, %v1326
    %v1478 = vmul.f32 %v1413, %v1413
    %v1479 = vmul.f32 %v1241, %v1241
    %v1480 = vmul.f32 %v1328, %v1328
    %v1481 = vmul.f32 %v1415, %v1415
    %v1482 = vmul.f32 %v1244, %v1244
    %v1483 = vmul.f32 %v1331, %v1331
    %v1484 = vmul.f32 %v1418, %v1418
    %v1485 = vmul.f32 %v1246, %v1246
    %v1486 = vmul.f32 %v1333, %v1333
    %v1487 = vmul.f32 %v1420, %v1420
    %v1488 = vmul.f32 %v1249, %v1249
    %v1489 = vmul.f32 %v1336, %v1336
    %v1490 = vmul.f32 %v1423, %v1423
    %v1491 = vmul.f32 %v1251, %v1251
    %v1492 = vmul.f32 %v1338, %v1338
    %v1493 = vmul.f32 %v1425, %v1425
    %v1494 = vadd.f32 %v1470, %v1473
    %v1495 = vadd.f32 %v1494, %v1476
    %v1496 = vadd.f32 %v1495, %v1479
    %v1497 = vadd.f32 %v1496, %v1482
    %v1498 = vadd.f32 %v1497, %v1485
    %v1499 = vadd.f32 %v1498, %v1488
    %v1500 = vadd.f32 %v1499, %v1491
    %v1501 = vrot.slane %v1500, 4
    %v1502 = vadd.f32 %v1500, %v1501
    %v1503 = vrot.slane %v1502, 2
    %v1504 = vadd.f32 %v1502, %v1503
    %v1505 = vrot.slane %v1504, 1
    %v1506 = vadd.f32 %v1504, %v1505
    %v1507 = vadd.f32 %v1471, %v1474
    %v1508 = vadd.f32 %v1507, %v1477
    %v1509 = vadd.f32 %v1508, %v1480
    %v1510 = vadd.f32 %v1509, %v1483
    %v1511 = vadd.f32 %v1510, %v1486
    %v1512 = vadd.f32 %v1511, %v1489
    %v1513 = vadd.f32 %v1512, %v1492
    %v1514 = vrot.slane %v1513, 4
    %v1515 = vadd.f32 %v1513, %v1514
    %v1516 = vrot.slane %v1515, 2
    %v1517 = vadd.f32 %v1515, %v1516
    %v1518 = vrot.slane %v1517, 1
    %v1519 = vadd.f32 %v1517, %v1518
    %v1520 = vadd.f32 %v1472, %v1475
    %v1521 = vadd.f32 %v1520, %v1478
    %v1522 = vadd.f32 %v1521, %v1481
    %v1523 = vadd.f32 %v1522, %v1484
    %v1524 = vadd.f32 %v1523, %v1487
    %v1525 = vadd.f32 %v1524, %v1490
    %v1526 = vadd.f32 %v1525, %v1493
    %v1527 = vrot.slane %v1526, 4
    %v1528 = vadd.f32 %v1526, %v1527
    %v1529 = vrot.slane %v1528, 2
    %v1530 = vadd.f32 %v1528, %v1529
    %v1531 = vrot.slane %v1530, 1
    %v1532 = vadd.f32 %v1530, %v1531
    %v1533 = vmul.f32 %v1443, 0.015625
    %v1534 = vmul.f32 %v1456, 0.015625
    %v1535 = vmul.f32 %v1469, 0.015625
    %v1536 = vmul.f32 %v1506, 0.015625
    %v1537 = vmul.f32 %v1519, 0.015625
    %v1538 = vmul.f32 %v1532, 0.015625
    %v1539 = vmul.f32 %v1533, %v1533
    %v1540 = vmul.f32 %v1534, %v1534
    %v1541 = vmul.f32 %v1535, %v1535
    %v1542 = vsub.f32 %v1536, %v1539
    %v1543 = vsub.f32 %v1537, %v1540
    %v1544 = vsub.f32 %v1538, %v1541
    %v1545 = vmax.f32 %v1542, 0.0
    %v1546 = vmax.f32 %v1543, 0.0
    %v1547 = vmax.f32 %v1544, 0.0
    %v1548 = vadd.f32 %v1545, 1e-05
    %v1549 = vadd.f32 %v1546, 1e-05
    %v1550 = vadd.f32 %v1547, 1e-05
    %v1551 = vrsqrt.pop %v1548
    %v1552 = vmul.f32 %v1551, %v1548
    %v1553 = vmul.f32 %v1552, %v1551
    %v1554 = vmul.f32 0.5, %v1553
    %v1555 = vsub.f32 1.5, %v1554
    %v1556 = vmul.f32 %v1551, %v1555
    %vm1557 = vweird.f32 %v1548
    %vm1558 = vweird.f32 %v1551
    %vm1559 = vmor %vm1557, %vm1558
    %v1560 = vsel %vm1559, %v1551, %v1556
    %v1561 = vrsqrt.pop %v1549
    %v1562 = vmul.f32 %v1561, %v1549
    %v1563 = vmul.f32 %v1562, %v1561
    %v1564 = vmul.f32 0.5, %v1563
    %v1565 = vsub.f32 1.5, %v1564
    %v1566 = vmul.f32 %v1561, %v1565
    %vm1567 = vweird.f32 %v1549
    %vm1568 = vweird.f32 %v1561
    %vm1569 = vmor %vm1567, %vm1568
    %v1570 = vsel %vm1569, %v1561, %v1566
    %v1571 = vrsqrt.pop %v1550
    %v1572 = vmul.f32 %v1571, %v1550
    %v1573 = vmul.f32 %v1572, %v1571
    %v1574 = vmul.f32 0.5, %v1573
    %v1575 = vsub.f32 1.5, %v1574
    %v1576 = vmul.f32 %v1571, %v1575
    %vm1577 = vweird.f32 %v1550
    %vm1578 = vweird.f32 %v1571
    %vm1579 = vmor %vm1577, %vm1578
    %v1580 = vsel %vm1579, %v1571, %v1576
    %v1584 = vrot.slane %v1570, 7
    %v1585 = vrot.slane %v1580, 6
    %v1586 = vsel %vm558, %v1560, %v1584
    %v1587 = vsel %vm560, %v1586, %v1585
    %v1589 = vmul.f32 %v1428, %v1587
    %v1590 = vsub.f32 %v1234, %v1533
    %v1591 = vsub.f32 %v1321, %v1534
    %v1592 = vsub.f32 %v1408, %v1535
    %v1593 = vsub.f32 %v1236, %v1533
    %v1594 = vsub.f32 %v1323, %v1534
    %v1595 = vsub.f32 %v1410, %v1535
    %v1596 = vsub.f32 %v1239, %v1533
    %v1597 = vsub.f32 %v1326, %v1534
    %v1598 = vsub.f32 %v1413, %v1535
    %v1599 = vsub.f32 %v1241, %v1533
    %v1600 = vsub.f32 %v1328, %v1534
    %v1601 = vsub.f32 %v1415, %v1535
    %v1602 = vsub.f32 %v1244, %v1533
    %v1603 = vsub.f32 %v1331, %v1534
    %v1604 = vsub.f32 %v1418, %v1535
    %v1605 = vsub.f32 %v1246, %v1533
    %v1606 = vsub.f32 %v1333, %v1534
    %v1607 = vsub.f32 %v1420, %v1535
    %v1608 = vsub.f32 %v1249, %v1533
    %v1609 = vsub.f32 %v1336, %v1534
    %v1610 = vsub.f32 %v1423, %v1535
    %v1611 = vsub.f32 %v1251, %v1533
    %v1612 = vsub.f32 %v1338, %v1534
    %v1613 = vsub.f32 %v1425, %v1535
    %v1615 = vperm.slane %v1589, 0
    %v1616 = vperm.slane %v1589, 1
    %v1617 = vperm.slane %v1589, 2
    %v1621 = vmul.f32 %v1590, %v1615
    %v1622 = vmul.f32 %v1591, %v1616
    %v1623 = vmul.f32 %v1592, %v1617
    %v1624 = vmul.f32 %v1593, %v1615
    %v1625 = vmul.f32 %v1594, %v1616
    %v1626 = vmul.f32 %v1595, %v1617
    %v1627 = vmul.f32 %v1596, %v1615
    %v1628 = vmul.f32 %v1597, %v1616
    %v1629 = vmul.f32 %v1598, %v1617
    %v1630 = vmul.f32 %v1599, %v1615
    %v1631 = vmul.f32 %v1600, %v1616
    %v1632 = vmul.f32 %v1601, %v1617
    %v1633 = vmul.f32 %v1602, %v1615
    %v1634 = vmul.f32 %v1603, %v1616
    %v1635 = vmul.f32 %v1604, %v1617
    %v1636 = vmul.f32 %v1605, %v1615
    %v1637 = vmul.f32 %v1606, %v1616
    %v1638 = vmul.f32 %v1607, %v1617
    %v1639 = vmul.f32 %v1608, %v1615
    %v1640 = vmul.f32 %v1609, %v1616
    %v1641 = vmul.f32 %v1610, %v1617
    %v1642 = vmul.f32 %v1611, %v1615
    %v1643 = vmul.f32 %v1612, %v1616
    %v1644 = vmul.f32 %v1613, %v1617
    %v1646 = vperm.slane %v1430, 0
    %v1647 = vperm.slane %v1430, 1
    %v1648 = vperm.slane %v1430, 2
    %v1652 = vadd.f32 %v1621, %v1646
    %v1653 = vadd.f32 %v1622, %v1647
    %v1654 = vadd.f32 %v1623, %v1648
    %v1655 = vadd.f32 %v1624, %v1646
    %v1656 = vadd.f32 %v1625, %v1647
    %v1657 = vadd.f32 %v1626, %v1648
    %v1658 = vadd.f32 %v1627, %v1646
    %v1659 = vadd.f32 %v1628, %v1647
    %v1660 = vadd.f32 %v1629, %v1648
    %v1661 = vadd.f32 %v1630, %v1646
    %v1662 = vadd.f32 %v1631, %v1647
    %v1663 = vadd.f32 %v1632, %v1648
    %v1664 = vadd.f32 %v1633, %v1646
    %v1665 = vadd.f32 %v1634, %v1647
    %v1666 = vadd.f32 %v1635, %v1648
    %v1667 = vadd.f32 %v1636, %v1646
    %v1668 = vadd.f32 %v1637, %v1647
    %v1669 = vadd.f32 %v1638, %v1648
    %v1670 = vadd.f32 %v1639, %v1646
    %v1671 = vadd.f32 %v1640, %v1647
    %v1672 = vadd.f32 %v1641, %v1648
    %v1673 = vadd.f32 %v1642, %v1646
    %v1674 = vadd.f32 %v1643, %v1647
    %v1675 = vadd.f32 %v1644, %v1648
    %v1676 = vmax.f32 %v1652, 0.0
    %v1677 = vmax.f32 %v1653, 0.0
    %v1678 = vmax.f32 %v1654, 0.0
    %v1679 = vmax.f32 %v1655, 0.0
    %v1680 = vmax.f32 %v1656, 0.0
    %v1681 = vmax.f32 %v1657, 0.0
    %v1682 = vmax.f32 %v1658, 0.0
    %v1683 = vmax.f32 %v1659, 0.0
    %v1684 = vmax.f32 %v1660, 0.0
    %v1685 = vmax.f32 %v1661, 0.0
    %v1686 = vmax.f32 %v1662, 0.0
    %v1687 = vmax.f32 %v1663, 0.0
    %v1688 = vmax.f32 %v1664, 0.0
    %v1689 = vmax.f32 %v1665, 0.0
    %v1690 = vmax.f32 %v1666, 0.0
    %v1691 = vmax.f32 %v1667, 0.0
    %v1692 = vmax.f32 %v1668, 0.0
    %v1693 = vmax.f32 %v1669, 0.0
    %v1694 = vmax.f32 %v1670, 0.0
    %v1695 = vmax.f32 %v1671, 0.0
    %v1696 = vmax.f32 %v1672, 0.0
    %v1697 = vmax.f32 %v1673, 0.0
    %v1698 = vmax.f32 %v1674, 0.0
    %v1699 = vmax.f32 %v1675, 0.0
    %v1700 = vpack.c.bf16 %v1679, %v1676
    %v1701 = vpack.c.bf16 %v1680, %v1677
    %v1702 = vpack.c.bf16 %v1681, %v1678
    %v1703 = vpack.c.bf16 %v1685, %v1682
    %v1704 = vpack.c.bf16 %v1686, %v1683
    %v1705 = vpack.c.bf16 %v1687, %v1684
    %v1706 = vpack.c.bf16 %v1691, %v1688
    %v1707 = vpack.c.bf16 %v1692, %v1689
    %v1708 = vpack.c.bf16 %v1693, %v1690
    %v1709 = vpack.c.bf16 %v1697, %v1694
    %v1710 = vpack.c.bf16 %v1698, %v1695
    %v1711 = vpack.c.bf16 %v1699, %v1696
    %v1712 = vld [vmem:[#allocation4] sm:$0xff]
    %v1713 = vld [vmem:[#allocation4 + $0x8] sm:$0xf]
    %v1714 = vld [vmem:[#allocation4 + $0xc] sm:$0xff]
    %v1715 = vld [vmem:[#allocation4 + $0x14] sm:$0xf]
    %v1716 = vld [vmem:[#allocation4 + $0x18] sm:$0xff]
    %v1717 = vld [vmem:[#allocation4 + $0x20] sm:$0xf]
    %v1718 = vld [vmem:[#allocation4 + $0x24] sm:$0xff]
    %v1719 = vld [vmem:[#allocation4 + $0x2c] sm:$0xf]
    %v1720 = vld [vmem:[#allocation4 + $0x30] sm:$0xff]
    %v1721 = vld [vmem:[#allocation4 + $0x38] sm:$0xf]
    %v1722 = vld [vmem:[#allocation4 + $0x3c] sm:$0xff]
    %v1723 = vld [vmem:[#allocation4 + $0x44] sm:$0xf]
    %v1724 = vld [vmem:[#allocation4 + $0x48] sm:$0xff]
    %v1725 = vld [vmem:[#allocation4 + $0x50] sm:$0xf]
    %v1726 = vld [vmem:[#allocation4 + $0x54] sm:$0xff]
    %v1727 = vld [vmem:[#allocation4 + $0x5c] sm:$0xf]
    %v1728 = vld [vmem:[#allocation4 + $0x60] sm:$0xff]
    %v1729 = vld [vmem:[#allocation4 + $0x68] sm:$0xf]
    %v1730 = vld [vmem:[#allocation4 + $0x6c] sm:$0xff]
    %v1731 = vld [vmem:[#allocation4 + $0x74] sm:$0xf]
    %v1732 = vld [vmem:[#allocation4 + $0x78] sm:$0xff]
    %v1733 = vld [vmem:[#allocation4 + $0x80] sm:$0xf]
    %v1734 = vld [vmem:[#allocation4 + $0x84] sm:$0xff]
    %v1735 = vld [vmem:[#allocation4 + $0x8c] sm:$0xf]
    %v1736 = vld [vmem:[#allocation4 + $0x90] sm:$0xff]
    %v1737 = vld [vmem:[#allocation4 + $0x98] sm:$0xf]
    %v1738 = vld [vmem:[#allocation4 + $0x9c] sm:$0xff]
    %v1739 = vld [vmem:[#allocation4 + $0xa4] sm:$0xf]
    %v1740 = vld [vmem:[#allocation4 + $0xa8] sm:$0xff]
    %v1741 = vld [vmem:[#allocation4 + $0xb0] sm:$0xf]
    %v1742 = vld [vmem:[#allocation4 + $0xb4] sm:$0xff]
    %v1743 = vld [vmem:[#allocation4 + $0xbc] sm:$0xf]
    %v1744 = vld [vmem:[#allocation4 + $0xc0] sm:$0xff]
    %v1745 = vld [vmem:[#allocation4 + $0xc8] sm:$0xf]
    %v1746 = vld [vmem:[#allocation4 + $0xcc] sm:$0xff]
    %v1747 = vld [vmem:[#allocation4 + $0xd4] sm:$0xf]
    %v1748 = vld [vmem:[#allocation4 + $0xd8] sm:$0xff]
    %v1749 = vld [vmem:[#allocation4 + $0xe0] sm:$0xf]
    %v1750 = vld [vmem:[#allocation4 + $0xe4] sm:$0xff]
    %v1751 = vld [vmem:[#allocation4 + $0xec] sm:$0xf]
    %v1752 = vld [vmem:[#allocation4 + $0xf0] sm:$0xff]
    %v1753 = vld [vmem:[#allocation4 + $0xf8] sm:$0xf]
    %v1754 = vld [vmem:[#allocation4 + $0xfc] sm:$0xff]
    %v1755 = vld [vmem:[#allocation4 + $0x104] sm:$0xf]
    %v1756 = vld [vmem:[#allocation4 + $0x108] sm:$0xff]
    %v1757 = vld [vmem:[#allocation4 + $0x110] sm:$0xf]
    %v1758 = vld [vmem:[#allocation4 + $0x114] sm:$0xff]
    %v1759 = vld [vmem:[#allocation4 + $0x11c] sm:$0xf]
    %v1760 = vld [vmem:[#allocation4 + $0x120] sm:$0xff]
    %v1761 = vld [vmem:[#allocation4 + $0x128] sm:$0xf]
    %v1762 = vld [vmem:[#allocation4 + $0x12c] sm:$0xff]
    %v1763 = vld [vmem:[#allocation4 + $0x134] sm:$0xf]
    %v1764 = vld [vmem:[#allocation4 + $0x138] sm:$0xff]
    %v1765 = vld [vmem:[#allocation4 + $0x140] sm:$0xf]
    %v1766 = vld [vmem:[#allocation4 + $0x144] sm:$0xff]
    %v1767 = vld [vmem:[#allocation4 + $0x14c] sm:$0xf]
    %v1768 = vld [vmem:[#allocation4 + $0x150] sm:$0xff]
    %v1769 = vld [vmem:[#allocation4 + $0x158] sm:$0xf]
    %v1770 = vld [vmem:[#allocation4 + $0x15c] sm:$0xff]
    %v1771 = vld [vmem:[#allocation4 + $0x164] sm:$0xf]
    %v1772 = vld [vmem:[#allocation4 + $0x168] sm:$0xff]
    %v1773 = vld [vmem:[#allocation4 + $0x170] sm:$0xf]
    %v1774 = vld [vmem:[#allocation4 + $0x174] sm:$0xff]
    %v1775 = vld [vmem:[#allocation4 + $0x17c] sm:$0xf]
    %v1776 = vld [vmem:[#allocation4 + $0x180] sm:$0xff]
    %v1777 = vld [vmem:[#allocation4 + $0x188] sm:$0xf]
    %v1778 = vld [vmem:[#allocation4 + $0x18c] sm:$0xff]
    %v1779 = vld [vmem:[#allocation4 + $0x194] sm:$0xf]
    %v1780 = vld [vmem:[#allocation4 + $0x198] sm:$0xff]
    %v1781 = vld [vmem:[#allocation4 + $0x1a0] sm:$0xf]
    %v1782 = vld [vmem:[#allocation4 + $0x1a4] sm:$0xff]
    %v1783 = vld [vmem:[#allocation4 + $0x1ac] sm:$0xf]
    %v1784 = vld [vmem:[#allocation4 + $0x1b0] sm:$0xff]
    %v1785 = vld [vmem:[#allocation4 + $0x1b8] sm:$0xf]
    %v1786 = vld [vmem:[#allocation4 + $0x1bc] sm:$0xff]
    %v1787 = vld [vmem:[#allocation4 + $0x1c4] sm:$0xf]
    %v1788 = vld [vmem:[#allocation4 + $0x1c8] sm:$0xff]
    %v1789 = vld [vmem:[#allocation4 + $0x1d0] sm:$0xf]
    %v1790 = vld [vmem:[#allocation4 + $0x1d4] sm:$0xff]
    %v1791 = vld [vmem:[#allocation4 + $0x1dc] sm:$0xf]
    %v1792 = vld [vmem:[#allocation4 + $0x1e0] sm:$0xff]
    %v1793 = vld [vmem:[#allocation4 + $0x1e8] sm:$0xf]
    %v1794 = vld [vmem:[#allocation4 + $0x1ec] sm:$0xff]
    %v1795 = vld [vmem:[#allocation4 + $0x1f4] sm:$0xf]
    %v1796 = vld [vmem:[#allocation4 + $0x1f8] sm:$0xff]
    %v1797 = vld [vmem:[#allocation4 + $0x200] sm:$0xf]
    %v1798 = vld [vmem:[#allocation4 + $0x204] sm:$0xff]
    %v1799 = vld [vmem:[#allocation4 + $0x20c] sm:$0xf]
    %v1800 = vld [vmem:[#allocation4 + $0x210] sm:$0xff]
    %v1801 = vld [vmem:[#allocation4 + $0x218] sm:$0xf]
    %v1802 = vld [vmem:[#allocation4 + $0x21c] sm:$0xff]
    %v1803 = vld [vmem:[#allocation4 + $0x224] sm:$0xf]
    %v1804 = vld [vmem:[#allocation4 + $0x228] sm:$0xff]
    %v1805 = vld [vmem:[#allocation4 + $0x230] sm:$0xf]
    %v1806 = vld [vmem:[#allocation4 + $0x234] sm:$0xff]
    %v1807 = vld [vmem:[#allocation4 + $0x23c] sm:$0xf]
    %v1904 = vunpack.c.l.b16 %v1712
    %v1905 = vunpack.c.h.b16 %v1712
    %v1906 = vunpack.c.l.b16 %v1713
    %v1907 = vunpack.c.l.b16 %v1714
    %v1908 = vunpack.c.h.b16 %v1714
    %v1909 = vunpack.c.l.b16 %v1715
    %v1910 = vunpack.c.l.b16 %v1716
    %v1911 = vunpack.c.h.b16 %v1716
    %v1912 = vunpack.c.l.b16 %v1717
    %v1913 = vunpack.c.l.b16 %v1718
    %v1914 = vunpack.c.h.b16 %v1718
    %v1915 = vunpack.c.l.b16 %v1719
    %v1916 = vunpack.c.l.b16 %v1720
    %v1917 = vunpack.c.h.b16 %v1720
    %v1918 = vunpack.c.l.b16 %v1721
    %v1919 = vunpack.c.l.b16 %v1722
    %v1920 = vunpack.c.h.b16 %v1722
    %v1921 = vunpack.c.l.b16 %v1723
    %v1922 = vunpack.c.l.b16 %v1724
    %v1923 = vunpack.c.h.b16 %v1724
    %v1924 = vunpack.c.l.b16 %v1725
    %v1925 = vunpack.c.l.b16 %v1726
    %v1926 = vunpack.c.h.b16 %v1726
    %v1927 = vunpack.c.l.b16 %v1727
    %v1928 = vunpack.c.l.b16 %v1728
    %v1929 = vunpack.c.h.b16 %v1728
    %v1930 = vunpack.c.l.b16 %v1729
    %v1931 = vunpack.c.l.b16 %v1730
    %v1932 = vunpack.c.h.b16 %v1730
    %v1933 = vunpack.c.l.b16 %v1731
    %v1934 = vunpack.c.l.b16 %v1732
    %v1935 = vunpack.c.h.b16 %v1732
    %v1936 = vunpack.c.l.b16 %v1733
    %v1937 = vunpack.c.l.b16 %v1734
    %v1938 = vunpack.c.h.b16 %v1734
    %v1939 = vunpack.c.l.b16 %v1735
    %v1940 = vunpack.c.l.b16 %v1736
    %v1941 = vunpack.c.h.b16 %v1736
    %v1942 = vunpack.c.l.b16 %v1737
    %v1943 = vunpack.c.l.b16 %v1738
    %v1944 = vunpack.c.h.b16 %v1738
    %v1945 = vunpack.c.l.b16 %v1739
    %v1946 = vunpack.c.l.b16 %v1740
    %v1947 = vunpack.c.h.b16 %v1740
    %v1948 = vunpack.c.l.b16 %v1741
    %v1949 = vunpack.c.l.b16 %v1742
    %v1950 = vunpack.c.h.b16 %v1742
    %v1951 = vunpack.c.l.b16 %v1743
    %v1952 = vunpack.c.l.b16 %v1744
    %v1953 = vunpack.c.h.b16 %v1744
    %v1954 = vunpack.c.l.b16 %v1745
    %v1955 = vunpack.c.l.b16 %v1746
    %v1956 = vunpack.c.h.b16 %v1746
    %v1957 = vunpack.c.l.b16 %v1747
    %v1958 = vunpack.c.l.b16 %v1748
    %v1959 = vunpack.c.h.b16 %v1748
    %v1960 = vunpack.c.l.b16 %v1749
    %v1961 = vunpack.c.l.b16 %v1750
    %v1962 = vunpack.c.h.b16 %v1750
    %v1963 = vunpack.c.l.b16 %v1751
    %v1964 = vunpack.c.l.b16 %v1752
    %v1965 = vunpack.c.h.b16 %v1752
    %v1966 = vunpack.c.l.b16 %v1753
    %v1967 = vunpack.c.l.b16 %v1754
    %v1968 = vunpack.c.h.b16 %v1754
    %v1969 = vunpack.c.l.b16 %v1755
    %v1970 = vunpack.c.l.b16 %v1756
    %v1971 = vunpack.c.h.b16 %v1756
    %v1972 = vunpack.c.l.b16 %v1757
    %v1973 = vunpack.c.l.b16 %v1758
    %v1974 = vunpack.c.h.b16 %v1758
    %v1975 = vunpack.c.l.b16 %v1759
    %v1976 = vunpack.c.l.b16 %v1760
    %v1977 = vunpack.c.h.b16 %v1760
    %v1978 = vunpack.c.l.b16 %v1761
    %v1979 = vunpack.c.l.b16 %v1762
    %v1980 = vunpack.c.h.b16 %v1762
    %v1981 = vunpack.c.l.b16 %v1763
    %v1982 = vunpack.c.l.b16 %v1764
    %v1983 = vunpack.c.h.b16 %v1764
    %v1984 = vunpack.c.l.b16 %v1765
    %v1985 = vunpack.c.l.b16 %v1766
    %v1986 = vunpack.c.h.b16 %v1766
    %v1987 = vunpack.c.l.b16 %v1767
    %v1988 = vunpack.c.l.b16 %v1768
    %v1989 = vunpack.c.h.b16 %v1768
    %v1990 = vunpack.c.l.b16 %v1769
    %v1991 = vunpack.c.l.b16 %v1770
    %v1992 = vunpack.c.h.b16 %v1770
    %v1993 = vunpack.c.l.b16 %v1771
    %v1994 = vunpack.c.l.b16 %v1772
    %v1995 = vunpack.c.h.b16 %v1772
    %v1996 = vunpack.c.l.b16 %v1773
    %v1997 = vunpack.c.l.b16 %v1774
    %v1998 = vunpack.c.h.b16 %v1774
    %v1999 = vunpack.c.l.b16 %v1775
    %v2000 = vunpack.c.l.b16 %v1776
    %v2001 = vunpack.c.h.b16 %v1776
    %v2002 = vunpack.c.l.b16 %v1777
    %v2003 = vunpack.c.l.b16 %v1778
    %v2004 = vunpack.c.h.b16 %v1778
    %v2005 = vunpack.c.l.b16 %v1779
    %v2006 = vunpack.c.l.b16 %v1780
    %v2007 = vunpack.c.h.b16 %v1780
    %v2008 = vunpack.c.l.b16 %v1781
    %v2009 = vunpack.c.l.b16 %v1782
    %v2010 = vunpack.c.h.b16 %v1782
    %v2011 = vunpack.c.l.b16 %v1783
    %v2012 = vunpack.c.l.b16 %v1784
    %v2013 = vunpack.c.h.b16 %v1784
    %v2014 = vunpack.c.l.b16 %v1785
    %v2015 = vunpack.c.l.b16 %v1786
    %v2016 = vunpack.c.h.b16 %v1786
    %v2017 = vunpack.c.l.b16 %v1787
    %v2018 = vunpack.c.l.b16 %v1788
    %v2019 = vunpack.c.h.b16 %v1788
    %v2020 = vunpack.c.l.b16 %v1789
    %v2021 = vunpack.c.l.b16 %v1790
    %v2022 = vunpack.c.h.b16 %v1790
    %v2023 = vunpack.c.l.b16 %v1791
    %v2024 = vunpack.c.l.b16 %v1792
    %v2025 = vunpack.c.h.b16 %v1792
    %v2026 = vunpack.c.l.b16 %v1793
    %v2027 = vunpack.c.l.b16 %v1794
    %v2028 = vunpack.c.h.b16 %v1794
    %v2029 = vunpack.c.l.b16 %v1795
    %v2030 = vunpack.c.l.b16 %v1796
    %v2031 = vunpack.c.h.b16 %v1796
    %v2032 = vunpack.c.l.b16 %v1797
    %v2033 = vunpack.c.l.b16 %v1798
    %v2034 = vunpack.c.h.b16 %v1798
    %v2035 = vunpack.c.l.b16 %v1799
    %v2036 = vunpack.c.l.b16 %v1800
    %v2037 = vunpack.c.h.b16 %v1800
    %v2038 = vunpack.c.l.b16 %v1801
    %v2039 = vunpack.c.l.b16 %v1802
    %v2040 = vunpack.c.h.b16 %v1802
    %v2041 = vunpack.c.l.b16 %v1803
    %v2042 = vunpack.c.l.b16 %v1804
    %v2043 = vunpack.c.h.b16 %v1804
    %v2044 = vunpack.c.l.b16 %v1805
    %v2045 = vunpack.c.l.b16 %v1806
    %v2046 = vunpack.c.h.b16 %v1806
    %v2047 = vunpack.c.l.b16 %v1807
    %v2048 = vpack.c.b16 %v1907, %v1904
    %v2049 = vpack.c.b16 %v1908, %v1905
    %v2050 = vpack.c.b16 %v1909, %v1906
    %v2051 = vpack.c.b16 %v1913, %v1910
    %v2052 = vpack.c.b16 %v1914, %v1911
    %v2053 = vpack.c.b16 %v1915, %v1912
    %v2054 = vpack.c.b16 %v1919, %v1916
    %v2055 = vpack.c.b16 %v1920, %v1917
    %v2056 = vpack.c.b16 %v1921, %v1918
    %v2057 = vpack.c.b16 %v1925, %v1922
    %v2058 = vpack.c.b16 %v1926, %v1923
    %v2059 = vpack.c.b16 %v1927, %v1924
    %v2060 = vpack.c.b16 %v1931, %v1928
    %v2061 = vpack.c.b16 %v1932, %v1929
    %v2062 = vpack.c.b16 %v1933, %v1930
    %v2063 = vpack.c.b16 %v1937, %v1934
    %v2064 = vpack.c.b16 %v1938, %v1935
    %v2065 = vpack.c.b16 %v1939, %v1936
    %v2066 = vpack.c.b16 %v1943, %v1940
    %v2067 = vpack.c.b16 %v1944, %v1941
    %v2068 = vpack.c.b16 %v1945, %v1942
    %v2069 = vpack.c.b16 %v1949, %v1946
    %v2070 = vpack.c.b16 %v1950, %v1947
    %v2071 = vpack.c.b16 %v1951, %v1948
    %v2072 = vpack.c.b16 %v1955, %v1952
    %v2073 = vpack.c.b16 %v1956, %v1953
    %v2074 = vpack.c.b16 %v1957, %v1954
    %v2075 = vpack.c.b16 %v1961, %v1958
    %v2076 = vpack.c.b16 %v1962, %v1959
    %v2077 = vpack.c.b16 %v1963, %v1960
    %v2078 = vpack.c.b16 %v1967, %v1964
    %v2079 = vpack.c.b16 %v1968, %v1965
    %v2080 = vpack.c.b16 %v1969, %v1966
    %v2081 = vpack.c.b16 %v1973, %v1970
    %v2082 = vpack.c.b16 %v1974, %v1971
    %v2083 = vpack.c.b16 %v1975, %v1972
    %v2084 = vpack.c.b16 %v1979, %v1976
    %v2085 = vpack.c.b16 %v1980, %v1977
    %v2086 = vpack.c.b16 %v1981, %v1978
    %v2087 = vpack.c.b16 %v1985, %v1982
    %v2088 = vpack.c.b16 %v1986, %v1983
    %v2089 = vpack.c.b16 %v1987, %v1984
    %v2090 = vpack.c.b16 %v1991, %v1988
    %v2091 = vpack.c.b16 %v1992, %v1989
    %v2092 = vpack.c.b16 %v1993, %v1990
    %v2093 = vpack.c.b16 %v1997, %v1994
    %v2094 = vpack.c.b16 %v1998, %v1995
    %v2095 = vpack.c.b16 %v1999, %v1996
    %v2096 = vpack.c.b16 %v2003, %v2000
    %v2097 = vpack.c.b16 %v2004, %v2001
    %v2098 = vpack.c.b16 %v2005, %v2002
    %v2099 = vpack.c.b16 %v2009, %v2006
    %v2100 = vpack.c.b16 %v2010, %v2007
    %v2101 = vpack.c.b16 %v2011, %v2008
    %v2102 = vpack.c.b16 %v2015, %v2012
    %v2103 = vpack.c.b16 %v2016, %v2013
    %v2104 = vpack.c.b16 %v2017, %v2014
    %v2105 = vpack.c.b16 %v2021, %v2018
    %v2106 = vpack.c.b16 %v2022, %v2019
    %v2107 = vpack.c.b16 %v2023, %v2020
    %v2108 = vpack.c.b16 %v2027, %v2024
    %v2109 = vpack.c.b16 %v2028, %v2025
    %v2110 = vpack.c.b16 %v2029, %v2026
    %v2111 = vpack.c.b16 %v2033, %v2030
    %v2112 = vpack.c.b16 %v2034, %v2031
    %v2113 = vpack.c.b16 %v2035, %v2032
    %v2114 = vpack.c.b16 %v2039, %v2036
    %v2115 = vpack.c.b16 %v2040, %v2037
    %v2116 = vpack.c.b16 %v2041, %v2038
    %v2117 = vpack.c.b16 %v2045, %v2042
    %v2118 = vpack.c.b16 %v2046, %v2043
    %v2119 = vpack.c.b16 %v2047, %v2044
    %2192 = vmatpush.bf16.msra.mxu0 %v2069
    %2193 = vmatpush.bf16.msra.mxu0 %v2066
    %2194 = vmatpush.bf16.msra.mxu0 %v2063
    %2195 = vmatpush.bf16.msra.mxu0 %v2060
    %2196 = vmatpush.bf16.msra.mxu0 %v2057
    %2197 = vmatpush.bf16.msra.mxu0 %v2054
    %2198 = vmatpush.bf16.msra.mxu0 %v2051
    %2199 = vmatpush.bf16.msra.mxu0 %v2048
    %2200 = vmatmul.bf16.gmra.mxu0 %v1700
    %v2201 = vpop.f32.mrf.mxu0
    %v2202 = vadd.f32 0.0, %v2201
    %v2203 = vpop.f32.mrf.mxu0
    %v2204 = vadd.f32 0.0, %v2203
    %2205 = vmatmul.bf16.gmra.mxu0 %v1703
    %v2206 = vpop.f32.mrf.mxu0
    %v2207 = vadd.f32 0.0, %v2206
    %v2208 = vpop.f32.mrf.mxu0
    %v2209 = vadd.f32 0.0, %v2208
    %2210 = vmatmul.bf16.gmra.mxu0 %v1706
    %v2211 = vpop.f32.mrf.mxu0
    %v2212 = vadd.f32 0.0, %v2211
    %v2213 = vpop.f32.mrf.mxu0
    %v2214 = vadd.f32 0.0, %v2213
    %2215 = vmatmul.bf16.gmra.mxu0 %v1709
    %v2216 = vpop.f32.mrf.mxu0
    %v2217 = vadd.f32 0.0, %v2216
    %v2218 = vpop.f32.mrf.mxu0
    %v2219 = vadd.f32 0.0, %v2218
    %2220 = vdwg.mxu0
    %2221 = vmatpush.bf16.msra.mxu0 %v2093
    %2222 = vmatpush.bf16.msra.mxu0 %v2090
    %2223 = vmatpush.bf16.msra.mxu0 %v2087
    %2224 = vmatpush.bf16.msra.mxu0 %v2084
    %2225 = vmatpush.bf16.msra.mxu0 %v2081
    %2226 = vmatpush.bf16.msra.mxu0 %v2078
    %2227 = vmatpush.bf16.msra.mxu0 %v2075
    %2228 = vmatpush.bf16.msra.mxu0 %v2072
    %2229 = vmatmul.bf16.gmra.mxu0 %v1701
    %v2230 = vpop.f32.mrf.mxu0
    %v2231 = vadd.f32 %v2202, %v2230
    %v2232 = vpop.f32.mrf.mxu0
    %v2233 = vadd.f32 %v2204, %v2232
    %2234 = vmatmul.bf16.gmra.mxu0 %v1704
    %v2235 = vpop.f32.mrf.mxu0
    %v2236 = vadd.f32 %v2207, %v2235
    %v2237 = vpop.f32.mrf.mxu0
    %v2238 = vadd.f32 %v2209, %v2237
    %2239 = vmatmul.bf16.gmra.mxu0 %v1707
    %v2240 = vpop.f32.mrf.mxu0
    %v2241 = vadd.f32 %v2212, %v2240
    %v2242 = vpop.f32.mrf.mxu0
    %v2243 = vadd.f32 %v2214, %v2242
    %2244 = vmatmul.bf16.gmra.mxu0 %v1710
    %v2245 = vpop.f32.mrf.mxu0
    %v2246 = vadd.f32 %v2217, %v2245
    %v2247 = vpop.f32.mrf.mxu0
    %v2248 = vadd.f32 %v2219, %v2247
    %2249 = vdwg.mxu0
    %2250 = vmatpush.bf16.msra.mxu0 %v2117
    %2251 = vmatpush.bf16.msra.mxu0 %v2114
    %2252 = vmatpush.bf16.msra.mxu0 %v2111
    %2253 = vmatpush.bf16.msra.mxu0 %v2108
    %2254 = vmatpush.bf16.msra.mxu0 %v2105
    %2255 = vmatpush.bf16.msra.mxu0 %v2102
    %2256 = vmatpush.bf16.msra.mxu0 %v2099
    %2257 = vmatpush.bf16.msra.mxu0 %v2096
    %2258 = vmatmul.bf16.gmra.mxu0 %v1702
    %v2259 = vpop.f32.mrf.mxu0
    %v2260 = vadd.f32 %v2231, %v2259
    %v2261 = vpop.f32.mrf.mxu0
    %v2262 = vadd.f32 %v2233, %v2261
    %2263 = vmatmul.bf16.gmra.mxu0 %v1705
    %v2264 = vpop.f32.mrf.mxu0
    %v2265 = vadd.f32 %v2236, %v2264
    %v2266 = vpop.f32.mrf.mxu0
    %v2267 = vadd.f32 %v2238, %v2266
    %2268 = vmatmul.bf16.gmra.mxu0 %v1708
    %v2269 = vpop.f32.mrf.mxu0
    %v2270 = vadd.f32 %v2241, %v2269
    %v2271 = vpop.f32.mrf.mxu0
    %v2272 = vadd.f32 %v2243, %v2271
    %2273 = vmatmul.bf16.gmra.mxu0 %v1711
    %v2274 = vpop.f32.mrf.mxu0
    %v2275 = vadd.f32 %v2246, %v2274
    %v2276 = vpop.f32.mrf.mxu0
    %v2277 = vadd.f32 %v2248, %v2276
    %2278 = vdwg.mxu0
    %2279 = vmatpush.bf16.msra.mxu0 %v2070
    %2280 = vmatpush.bf16.msra.mxu0 %v2067
    %2281 = vmatpush.bf16.msra.mxu0 %v2064
    %2282 = vmatpush.bf16.msra.mxu0 %v2061
    %2283 = vmatpush.bf16.msra.mxu0 %v2058
    %2284 = vmatpush.bf16.msra.mxu0 %v2055
    %2285 = vmatpush.bf16.msra.mxu0 %v2052
    %2286 = vmatpush.bf16.msra.mxu0 %v2049
    %2287 = vmatmul.bf16.gmra.mxu0 %v1700
    %v2288 = vpop.f32.mrf.mxu0
    %v2289 = vadd.f32 0.0, %v2288
    %v2290 = vpop.f32.mrf.mxu0
    %v2291 = vadd.f32 0.0, %v2290
    %2292 = vmatmul.bf16.gmra.mxu0 %v1703
    %v2293 = vpop.f32.mrf.mxu0
    %v2294 = vadd.f32 0.0, %v2293
    %v2295 = vpop.f32.mrf.mxu0
    %v2296 = vadd.f32 0.0, %v2295
    %2297 = vmatmul.bf16.gmra.mxu0 %v1706
    %v2298 = vpop.f32.mrf.mxu0
    %v2299 = vadd.f32 0.0, %v2298
    %v2300 = vpop.f32.mrf.mxu0
    %v2301 = vadd.f32 0.0, %v2300
    %2302 = vmatmul.bf16.gmra.mxu0 %v1709
    %v2303 = vpop.f32.mrf.mxu0
    %v2304 = vadd.f32 0.0, %v2303
    %v2305 = vpop.f32.mrf.mxu0
    %v2306 = vadd.f32 0.0, %v2305
    %2307 = vdwg.mxu0
    %2308 = vmatpush.bf16.msra.mxu0 %v2094
    %2309 = vmatpush.bf16.msra.mxu0 %v2091
    %2310 = vmatpush.bf16.msra.mxu0 %v2088
    %2311 = vmatpush.bf16.msra.mxu0 %v2085
    %2312 = vmatpush.bf16.msra.mxu0 %v2082
    %2313 = vmatpush.bf16.msra.mxu0 %v2079
    %2314 = vmatpush.bf16.msra.mxu0 %v2076
    %2315 = vmatpush.bf16.msra.mxu0 %v2073
    %2316 = vmatmul.bf16.gmra.mxu0 %v1701
    %v2317 = vpop.f32.mrf.mxu0
    %v2318 = vadd.f32 %v2289, %v2317
    %v2319 = vpop.f32.mrf.mxu0
    %v2320 = vadd.f32 %v2291, %v2319
    %2321 = vmatmul.bf16.gmra.mxu0 %v1704
    %v2322 = vpop.f32.mrf.mxu0
    %v2323 = vadd.f32 %v2294, %v2322
    %v2324 = vpop.f32.mrf.mxu0
    %v2325 = vadd.f32 %v2296, %v2324
    %2326 = vmatmul.bf16.gmra.mxu0 %v1707
    %v2327 = vpop.f32.mrf.mxu0
    %v2328 = vadd.f32 %v2299, %v2327
    %v2329 = vpop.f32.mrf.mxu0
    %v2330 = vadd.f32 %v2301, %v2329
    %2331 = vmatmul.bf16.gmra.mxu0 %v1710
    %v2332 = vpop.f32.mrf.mxu0
    %v2333 = vadd.f32 %v2304, %v2332
    %v2334 = vpop.f32.mrf.mxu0
    %v2335 = vadd.f32 %v2306, %v2334
    %2336 = vdwg.mxu0
    %2337 = vmatpush.bf16.msra.mxu0 %v2118
    %2338 = vmatpush.bf16.msra.mxu0 %v2115
    %2339 = vmatpush.bf16.msra.mxu0 %v2112
    %2340 = vmatpush.bf16.msra.mxu0 %v2109
    %2341 = vmatpush.bf16.msra.mxu0 %v2106
    %2342 = vmatpush.bf16.msra.mxu0 %v2103
    %2343 = vmatpush.bf16.msra.mxu0 %v2100
    %2344 = vmatpush.bf16.msra.mxu0 %v2097
    %2345 = vmatmul.bf16.gmra.mxu0 %v1702
    %v2346 = vpop.f32.mrf.mxu0
    %v2347 = vadd.f32 %v2318, %v2346
    %v2348 = vpop.f32.mrf.mxu0
    %v2349 = vadd.f32 %v2320, %v2348
    %2350 = vmatmul.bf16.gmra.mxu0 %v1705
    %v2351 = vpop.f32.mrf.mxu0
    %v2352 = vadd.f32 %v2323, %v2351
    %v2353 = vpop.f32.mrf.mxu0
    %v2354 = vadd.f32 %v2325, %v2353
    %2355 = vmatmul.bf16.gmra.mxu0 %v1708
    %v2356 = vpop.f32.mrf.mxu0
    %v2357 = vadd.f32 %v2328, %v2356
    %v2358 = vpop.f32.mrf.mxu0
    %v2359 = vadd.f32 %v2330, %v2358
    %2360 = vmatmul.bf16.gmra.mxu0 %v1711
    %v2361 = vpop.f32.mrf.mxu0
    %v2362 = vadd.f32 %v2333, %v2361
    %v2363 = vpop.f32.mrf.mxu0
    %v2364 = vadd.f32 %v2335, %v2363
    %2365 = vdwg.mxu0
    %2366 = vmatpush.bf16.msra.mxu0 %v2071
    %2367 = vmatpush.bf16.msra.mxu0 %v2068
    %2368 = vmatpush.bf16.msra.mxu0 %v2065
    %2369 = vmatpush.bf16.msra.mxu0 %v2062
    %2370 = vmatpush.bf16.msra.mxu0 %v2059
    %2371 = vmatpush.bf16.msra.mxu0 %v2056
    %2372 = vmatpush.bf16.msra.mxu0 %v2053
    %2373 = vmatpush.bf16.msra.mxu0 %v2050
    %2374 = vmatmul.bf16.gmra.mxu0 %v1700
    %v2375 = vpop.f32.mrf.mxu0
    %v2376 = vadd.f32 0.0, %v2375
    %v2377 = vpop.f32.mrf.mxu0
    %v2378 = vadd.f32 0.0, %v2377
    %2379 = vmatmul.bf16.gmra.mxu0 %v1703
    %v2380 = vpop.f32.mrf.mxu0
    %v2381 = vadd.f32 0.0, %v2380
    %v2382 = vpop.f32.mrf.mxu0
    %v2383 = vadd.f32 0.0, %v2382
    %2384 = vmatmul.bf16.gmra.mxu0 %v1706
    %v2385 = vpop.f32.mrf.mxu0
    %v2386 = vadd.f32 0.0, %v2385
    %v2387 = vpop.f32.mrf.mxu0
    %v2388 = vadd.f32 0.0, %v2387
    %2389 = vmatmul.bf16.gmra.mxu0 %v1709
    %v2390 = vpop.f32.mrf.mxu0
    %v2391 = vadd.f32 0.0, %v2390
    %v2392 = vpop.f32.mrf.mxu0
    %v2393 = vadd.f32 0.0, %v2392
    %2394 = vdwg.mxu0
    %2395 = vmatpush.bf16.msra.mxu0 %v2095
    %2396 = vmatpush.bf16.msra.mxu0 %v2092
    %2397 = vmatpush.bf16.msra.mxu0 %v2089
    %2398 = vmatpush.bf16.msra.mxu0 %v2086
    %2399 = vmatpush.bf16.msra.mxu0 %v2083
    %2400 = vmatpush.bf16.msra.mxu0 %v2080
    %2401 = vmatpush.bf16.msra.mxu0 %v2077
    %2402 = vmatpush.bf16.msra.mxu0 %v2074
    %2403 = vmatmul.bf16.gmra.mxu0 %v1701
    %v2404 = vpop.f32.mrf.mxu0
    %v2405 = vadd.f32 %v2376, %v2404
    %v2406 = vpop.f32.mrf.mxu0
    %v2407 = vadd.f32 %v2378, %v2406
    %2408 = vmatmul.bf16.gmra.mxu0 %v1704
    %v2409 = vpop.f32.mrf.mxu0
    %v2410 = vadd.f32 %v2381, %v2409
    %v2411 = vpop.f32.mrf.mxu0
    %v2412 = vadd.f32 %v2383, %v2411
    %2413 = vmatmul.bf16.gmra.mxu0 %v1707
    %v2414 = vpop.f32.mrf.mxu0
    %v2415 = vadd.f32 %v2386, %v2414
    %v2416 = vpop.f32.mrf.mxu0
    %v2417 = vadd.f32 %v2388, %v2416
    %2418 = vmatmul.bf16.gmra.mxu0 %v1710
    %v2419 = vpop.f32.mrf.mxu0
    %v2420 = vadd.f32 %v2391, %v2419
    %v2421 = vpop.f32.mrf.mxu0
    %v2422 = vadd.f32 %v2393, %v2421
    %2423 = vdwg.mxu0
    %2424 = vmatpush.bf16.msra.mxu0 %v2119
    %2425 = vmatpush.bf16.msra.mxu0 %v2116
    %2426 = vmatpush.bf16.msra.mxu0 %v2113
    %2427 = vmatpush.bf16.msra.mxu0 %v2110
    %2428 = vmatpush.bf16.msra.mxu0 %v2107
    %2429 = vmatpush.bf16.msra.mxu0 %v2104
    %2430 = vmatpush.bf16.msra.mxu0 %v2101
    %2431 = vmatpush.bf16.msra.mxu0 %v2098
    %2432 = vmatmul.bf16.gmra.mxu0 %v1702
    %v2433 = vpop.f32.mrf.mxu0
    %v2434 = vadd.f32 %v2405, %v2433
    %v2435 = vpop.f32.mrf.mxu0
    %v2436 = vadd.f32 %v2407, %v2435
    %2437 = vmatmul.bf16.gmra.mxu0 %v1705
    %v2438 = vpop.f32.mrf.mxu0
    %v2439 = vadd.f32 %v2410, %v2438
    %v2440 = vpop.f32.mrf.mxu0
    %v2441 = vadd.f32 %v2412, %v2440
    %2442 = vmatmul.bf16.gmra.mxu0 %v1708
    %v2443 = vpop.f32.mrf.mxu0
    %v2444 = vadd.f32 %v2415, %v2443
    %v2445 = vpop.f32.mrf.mxu0
    %v2446 = vadd.f32 %v2417, %v2445
    %2447 = vmatmul.bf16.gmra.mxu0 %v1711
    %v2448 = vpop.f32.mrf.mxu0
    %v2449 = vadd.f32 %v2420, %v2448
    %v2450 = vpop.f32.mrf.mxu0
    %v2451 = vadd.f32 %v2422, %v2450
    %2452 = vdwg.mxu0
    %s2453 = scalar_lea.vmem %s4, 6
    %v2454 = vld [vmem:[%s2453] ss:$8 sm:$0x7]
    %s2455 = scalar_lea.vmem %s4, 7
    %v2456 = vld [vmem:[%s2455] ss:$8 sm:$0x7]
    %v2457 = vadd.f32 %v2260, %v2262
    %v2458 = vadd.f32 %v2457, %v2265
    %v2459 = vadd.f32 %v2458, %v2267
    %v2460 = vadd.f32 %v2459, %v2270
    %v2461 = vadd.f32 %v2460, %v2272
    %v2462 = vadd.f32 %v2461, %v2275
    %v2463 = vadd.f32 %v2462, %v2277
    %v2464 = vrot.slane %v2463, 4
    %v2465 = vadd.f32 %v2463, %v2464
    %v2466 = vrot.slane %v2465, 2
    %v2467 = vadd.f32 %v2465, %v2466
    %v2468 = vrot.slane %v2467, 1
    %v2469 = vadd.f32 %v2467, %v2468
    %v2470 = vadd.f32 %v2347, %v2349
    %v2471 = vadd.f32 %v2470, %v2352
    %v2472 = vadd.f32 %v2471, %v2354
    %v2473 = vadd.f32 %v2472, %v2357
    %v2474 = vadd.f32 %v2473, %v2359
    %v2475 = vadd.f32 %v2474, %v2362
    %v2476 = vadd.f32 %v2475, %v2364
    %v2477 = vrot.slane %v2476, 4
    %v2478 = vadd.f32 %v2476, %v2477
    %v2479 = vrot.slane %v2478, 2
    %v2480 = vadd.f32 %v2478, %v2479
    %v2481 = vrot.slane %v2480, 1
    %v2482 = vadd.f32 %v2480, %v2481
    %v2483 = vadd.f32 %v2434, %v2436
    %v2484 = vadd.f32 %v2483, %v2439
    %v2485 = vadd.f32 %v2484, %v2441
    %v2486 = vadd.f32 %v2485, %v2444
    %v2487 = vadd.f32 %v2486, %v2446
    %v2488 = vadd.f32 %v2487, %v2449
    %v2489 = vadd.f32 %v2488, %v2451
    %v2490 = vrot.slane %v2489, 4
    %v2491 = vadd.f32 %v2489, %v2490
    %v2492 = vrot.slane %v2491, 2
    %v2493 = vadd.f32 %v2491, %v2492
    %v2494 = vrot.slane %v2493, 1
    %v2495 = vadd.f32 %v2493, %v2494
    %v2496 = vmul.f32 %v2260, %v2260
    %v2497 = vmul.f32 %v2347, %v2347
    %v2498 = vmul.f32 %v2434, %v2434
    %v2499 = vmul.f32 %v2262, %v2262
    %v2500 = vmul.f32 %v2349, %v2349
    %v2501 = vmul.f32 %v2436, %v2436
    %v2502 = vmul.f32 %v2265, %v2265
    %v2503 = vmul.f32 %v2352, %v2352
    %v2504 = vmul.f32 %v2439, %v2439
    %v2505 = vmul.f32 %v2267, %v2267
    %v2506 = vmul.f32 %v2354, %v2354
    %v2507 = vmul.f32 %v2441, %v2441
    %v2508 = vmul.f32 %v2270, %v2270
    %v2509 = vmul.f32 %v2357, %v2357
    %v2510 = vmul.f32 %v2444, %v2444
    %v2511 = vmul.f32 %v2272, %v2272
    %v2512 = vmul.f32 %v2359, %v2359
    %v2513 = vmul.f32 %v2446, %v2446
    %v2514 = vmul.f32 %v2275, %v2275
    %v2515 = vmul.f32 %v2362, %v2362
    %v2516 = vmul.f32 %v2449, %v2449
    %v2517 = vmul.f32 %v2277, %v2277
    %v2518 = vmul.f32 %v2364, %v2364
    %v2519 = vmul.f32 %v2451, %v2451
    %v2520 = vadd.f32 %v2496, %v2499
    %v2521 = vadd.f32 %v2520, %v2502
    %v2522 = vadd.f32 %v2521, %v2505
    %v2523 = vadd.f32 %v2522, %v2508
    %v2524 = vadd.f32 %v2523, %v2511
    %v2525 = vadd.f32 %v2524, %v2514
    %v2526 = vadd.f32 %v2525, %v2517
    %v2527 = vrot.slane %v2526, 4
    %v2528 = vadd.f32 %v2526, %v2527
    %v2529 = vrot.slane %v2528, 2
    %v2530 = vadd.f32 %v2528, %v2529
    %v2531 = vrot.slane %v2530, 1
    %v2532 = vadd.f32 %v2530, %v2531
    %v2533 = vadd.f32 %v2497, %v2500
    %v2534 = vadd.f32 %v2533, %v2503
    %v2535 = vadd.f32 %v2534, %v2506
    %v2536 = vadd.f32 %v2535, %v2509
    %v2537 = vadd.f32 %v2536, %v2512
    %v2538 = vadd.f32 %v2537, %v2515
    %v2539 = vadd.f32 %v2538, %v2518
    %v2540 = vrot.slane %v2539, 4
    %v2541 = vadd.f32 %v2539, %v2540
    %v2542 = vrot.slane %v2541, 2
    %v2543 = vadd.f32 %v2541, %v2542
    %v2544 = vrot.slane %v2543, 1
    %v2545 = vadd.f32 %v2543, %v2544
    %v2546 = vadd.f32 %v2498, %v2501
    %v2547 = vadd.f32 %v2546, %v2504
    %v2548 = vadd.f32 %v2547, %v2507
    %v2549 = vadd.f32 %v2548, %v2510
    %v2550 = vadd.f32 %v2549, %v2513
    %v2551 = vadd.f32 %v2550, %v2516
    %v2552 = vadd.f32 %v2551, %v2519
    %v2553 = vrot.slane %v2552, 4
    %v2554 = vadd.f32 %v2552, %v2553
    %v2555 = vrot.slane %v2554, 2
    %v2556 = vadd.f32 %v2554, %v2555
    %v2557 = vrot.slane %v2556, 1
    %v2558 = vadd.f32 %v2556, %v2557
    %v2559 = vmul.f32 %v2469, 0.015625
    %v2560 = vmul.f32 %v2482, 0.015625
    %v2561 = vmul.f32 %v2495, 0.015625
    %v2562 = vmul.f32 %v2532, 0.015625
    %v2563 = vmul.f32 %v2545, 0.015625
    %v2564 = vmul.f32 %v2558, 0.015625
    %v2565 = vmul.f32 %v2559, %v2559
    %v2566 = vmul.f32 %v2560, %v2560
    %v2567 = vmul.f32 %v2561, %v2561
    %v2568 = vsub.f32 %v2562, %v2565
    %v2569 = vsub.f32 %v2563, %v2566
    %v2570 = vsub.f32 %v2564, %v2567
    %v2571 = vmax.f32 %v2568, 0.0
    %v2572 = vmax.f32 %v2569, 0.0
    %v2573 = vmax.f32 %v2570, 0.0
    %v2574 = vadd.f32 %v2571, 1e-05
    %v2575 = vadd.f32 %v2572, 1e-05
    %v2576 = vadd.f32 %v2573, 1e-05
    %v2577 = vrsqrt.pop %v2574
    %v2578 = vmul.f32 %v2577, %v2574
    %v2579 = vmul.f32 %v2578, %v2577
    %v2580 = vmul.f32 0.5, %v2579
    %v2581 = vsub.f32 1.5, %v2580
    %v2582 = vmul.f32 %v2577, %v2581
    %vm2583 = vweird.f32 %v2574
    %vm2584 = vweird.f32 %v2577
    %vm2585 = vmor %vm2583, %vm2584
    %v2586 = vsel %vm2585, %v2577, %v2582
    %v2587 = vrsqrt.pop %v2575
    %v2588 = vmul.f32 %v2587, %v2575
    %v2589 = vmul.f32 %v2588, %v2587
    %v2590 = vmul.f32 0.5, %v2589
    %v2591 = vsub.f32 1.5, %v2590
    %v2592 = vmul.f32 %v2587, %v2591
    %vm2593 = vweird.f32 %v2575
    %vm2594 = vweird.f32 %v2587
    %vm2595 = vmor %vm2593, %vm2594
    %v2596 = vsel %vm2595, %v2587, %v2592
    %v2597 = vrsqrt.pop %v2576
    %v2598 = vmul.f32 %v2597, %v2576
    %v2599 = vmul.f32 %v2598, %v2597
    %v2600 = vmul.f32 0.5, %v2599
    %v2601 = vsub.f32 1.5, %v2600
    %v2602 = vmul.f32 %v2597, %v2601
    %vm2603 = vweird.f32 %v2576
    %vm2604 = vweird.f32 %v2597
    %vm2605 = vmor %vm2603, %vm2604
    %v2606 = vsel %vm2605, %v2597, %v2602
    %v2610 = vrot.slane %v2596, 7
    %v2611 = vrot.slane %v2606, 6
    %v2612 = vsel %vm558, %v2586, %v2610
    %v2613 = vsel %vm560, %v2612, %v2611
    %v2615 = vmul.f32 %v2454, %v2613
    %v2616 = vsub.f32 %v2260, %v2559
    %v2617 = vsub.f32 %v2347, %v2560
    %v2618 = vsub.f32 %v2434, %v2561
    %v2619 = vsub.f32 %v2262, %v2559
    %v2620 = vsub.f32 %v2349, %v2560
    %v2621 = vsub.f32 %v2436, %v2561
    %v2622 = vsub.f32 %v2265, %v2559
    %v2623 = vsub.f32 %v2352, %v2560
    %v2624 = vsub.f32 %v2439, %v2561
    %v2625 = vsub.f32 %v2267, %v2559
    %v2626 = vsub.f32 %v2354, %v2560
    %v2627 = vsub.f32 %v2441, %v2561
    %v2628 = vsub.f32 %v2270, %v2559
    %v2629 = vsub.f32 %v2357, %v2560
    %v2630 = vsub.f32 %v2444, %v2561
    %v2631 = vsub.f32 %v2272, %v2559
    %v2632 = vsub.f32 %v2359, %v2560
    %v2633 = vsub.f32 %v2446, %v2561
    %v2634 = vsub.f32 %v2275, %v2559
    %v2635 = vsub.f32 %v2362, %v2560
    %v2636 = vsub.f32 %v2449, %v2561
    %v2637 = vsub.f32 %v2277, %v2559
    %v2638 = vsub.f32 %v2364, %v2560
    %v2639 = vsub.f32 %v2451, %v2561
    %v2641 = vperm.slane %v2615, 0
    %v2642 = vperm.slane %v2615, 1
    %v2643 = vperm.slane %v2615, 2
    %v2647 = vmul.f32 %v2616, %v2641
    %v2648 = vmul.f32 %v2617, %v2642
    %v2649 = vmul.f32 %v2618, %v2643
    %v2650 = vmul.f32 %v2619, %v2641
    %v2651 = vmul.f32 %v2620, %v2642
    %v2652 = vmul.f32 %v2621, %v2643
    %v2653 = vmul.f32 %v2622, %v2641
    %v2654 = vmul.f32 %v2623, %v2642
    %v2655 = vmul.f32 %v2624, %v2643
    %v2656 = vmul.f32 %v2625, %v2641
    %v2657 = vmul.f32 %v2626, %v2642
    %v2658 = vmul.f32 %v2627, %v2643
    %v2659 = vmul.f32 %v2628, %v2641
    %v2660 = vmul.f32 %v2629, %v2642
    %v2661 = vmul.f32 %v2630, %v2643
    %v2662 = vmul.f32 %v2631, %v2641
    %v2663 = vmul.f32 %v2632, %v2642
    %v2664 = vmul.f32 %v2633, %v2643
    %v2665 = vmul.f32 %v2634, %v2641
    %v2666 = vmul.f32 %v2635, %v2642
    %v2667 = vmul.f32 %v2636, %v2643
    %v2668 = vmul.f32 %v2637, %v2641
    %v2669 = vmul.f32 %v2638, %v2642
    %v2670 = vmul.f32 %v2639, %v2643
    %v2672 = vperm.slane %v2456, 0
    %v2673 = vperm.slane %v2456, 1
    %v2674 = vperm.slane %v2456, 2
    %v2678 = vadd.f32 %v2647, %v2672
    %v2679 = vadd.f32 %v2648, %v2673
    %v2680 = vadd.f32 %v2649, %v2674
    %v2681 = vadd.f32 %v2650, %v2672
    %v2682 = vadd.f32 %v2651, %v2673
    %v2683 = vadd.f32 %v2652, %v2674
    %v2684 = vadd.f32 %v2653, %v2672
    %v2685 = vadd.f32 %v2654, %v2673
    %v2686 = vadd.f32 %v2655, %v2674
    %v2687 = vadd.f32 %v2656, %v2672
    %v2688 = vadd.f32 %v2657, %v2673
    %v2689 = vadd.f32 %v2658, %v2674
    %v2690 = vadd.f32 %v2659, %v2672
    %v2691 = vadd.f32 %v2660, %v2673
    %v2692 = vadd.f32 %v2661, %v2674
    %v2693 = vadd.f32 %v2662, %v2672
    %v2694 = vadd.f32 %v2663, %v2673
    %v2695 = vadd.f32 %v2664, %v2674
    %v2696 = vadd.f32 %v2665, %v2672
    %v2697 = vadd.f32 %v2666, %v2673
    %v2698 = vadd.f32 %v2667, %v2674
    %v2699 = vadd.f32 %v2668, %v2672
    %v2700 = vadd.f32 %v2669, %v2673
    %v2701 = vadd.f32 %v2670, %v2674
    %v2702 = vmax.f32 %v2678, 0.0
    %v2703 = vmax.f32 %v2679, 0.0
    %v2704 = vmax.f32 %v2680, 0.0
    %v2705 = vmax.f32 %v2681, 0.0
    %v2706 = vmax.f32 %v2682, 0.0
    %v2707 = vmax.f32 %v2683, 0.0
    %v2708 = vmax.f32 %v2684, 0.0
    %v2709 = vmax.f32 %v2685, 0.0
    %v2710 = vmax.f32 %v2686, 0.0
    %v2711 = vmax.f32 %v2687, 0.0
    %v2712 = vmax.f32 %v2688, 0.0
    %v2713 = vmax.f32 %v2689, 0.0
    %v2714 = vmax.f32 %v2690, 0.0
    %v2715 = vmax.f32 %v2691, 0.0
    %v2716 = vmax.f32 %v2692, 0.0
    %v2717 = vmax.f32 %v2693, 0.0
    %v2718 = vmax.f32 %v2694, 0.0
    %v2719 = vmax.f32 %v2695, 0.0
    %v2720 = vmax.f32 %v2696, 0.0
    %v2721 = vmax.f32 %v2697, 0.0
    %v2722 = vmax.f32 %v2698, 0.0
    %v2723 = vmax.f32 %v2699, 0.0
    %v2724 = vmax.f32 %v2700, 0.0
    %v2725 = vmax.f32 %v2701, 0.0
    %s2726 = scalar_lea.vmem %s4, 24
    %v2727 = vld [vmem:[%s2726] ss:$8 sm:$0x7]
    %v2729 = vperm.slane %v2727, 0
    %v2730 = vperm.slane %v2727, 1
    %v2731 = vperm.slane %v2727, 2
    %v2735 = vmul.f32 %v2702, %v2729
    %v2736 = vmul.f32 %v2703, %v2730
    %v2737 = vmul.f32 %v2704, %v2731
    %v2738 = vmul.f32 %v2705, %v2729
    %v2739 = vmul.f32 %v2706, %v2730
    %v2740 = vmul.f32 %v2707, %v2731
    %v2741 = vmul.f32 %v2708, %v2729
    %v2742 = vmul.f32 %v2709, %v2730
    %v2743 = vmul.f32 %v2710, %v2731
    %v2744 = vmul.f32 %v2711, %v2729
    %v2745 = vmul.f32 %v2712, %v2730
    %v2746 = vmul.f32 %v2713, %v2731
    %v2747 = vmul.f32 %v2714, %v2729
    %v2748 = vmul.f32 %v2715, %v2730
    %v2749 = vmul.f32 %v2716, %v2731
    %v2750 = vmul.f32 %v2717, %v2729
    %v2751 = vmul.f32 %v2718, %v2730
    %v2752 = vmul.f32 %v2719, %v2731
    %v2753 = vmul.f32 %v2720, %v2729
    %v2754 = vmul.f32 %v2721, %v2730
    %v2755 = vmul.f32 %v2722, %v2731
    %v2756 = vmul.f32 %v2723, %v2729
    %v2757 = vmul.f32 %v2724, %v2730
    %v2758 = vmul.f32 %v2725, %v2731
    %v2759 = vadd.f32 %v2735, %v2736
    %v2760 = vadd.f32 %v2759, %v2737
    %2761 = vadd.xlane.f32.xlu0 %v2760
    %v2762 = vpop.xlane.xlu0 %2761
    %v2763 = vadd.f32 %v2738, %v2739
    %v2764 = vadd.f32 %v2763, %v2740
    %2765 = vadd.xlane.f32.xlu0 %v2764
    %v2766 = vpop.xlane.xlu0 %2765
    %v2767 = vadd.f32 %v2741, %v2742
    %v2768 = vadd.f32 %v2767, %v2743
    %2769 = vadd.xlane.f32.xlu0 %v2768
    %v2770 = vpop.xlane.xlu0 %2769
    %v2771 = vadd.f32 %v2744, %v2745
    %v2772 = vadd.f32 %v2771, %v2746
    %2773 = vadd.xlane.f32.xlu0 %v2772
    %v2774 = vpop.xlane.xlu0 %2773
    %v2775 = vadd.f32 %v2747, %v2748
    %v2776 = vadd.f32 %v2775, %v2749
    %2777 = vadd.xlane.f32.xlu0 %v2776
    %v2778 = vpop.xlane.xlu0 %2777
    %v2779 = vadd.f32 %v2750, %v2751
    %v2780 = vadd.f32 %v2779, %v2752
    %2781 = vadd.xlane.f32.xlu0 %v2780
    %v2782 = vpop.xlane.xlu0 %2781
    %v2783 = vadd.f32 %v2753, %v2754
    %v2784 = vadd.f32 %v2783, %v2755
    %2785 = vadd.xlane.f32.xlu0 %v2784
    %v2786 = vpop.xlane.xlu0 %2785
    %v2787 = vadd.f32 %v2756, %v2757
    %v2788 = vadd.f32 %v2787, %v2758
    %2789 = vadd.xlane.f32.xlu0 %v2788
    %v2790 = vpop.xlane.xlu0 %2789
    %v2791 = vld [vmem:[%s4 + $0x19] ss:$0 sm:$0xff]
    %v2792 = vadd.f32 %v2762, %v2791
    %v2793 = vadd.f32 %v2766, %v2791
    %v2794 = vadd.f32 %v2770, %v2791
    %v2795 = vadd.f32 %v2774, %v2791
    %v2796 = vadd.f32 %v2778, %v2791
    %v2797 = vadd.f32 %v2782, %v2791
    %v2798 = vadd.f32 %v2786, %v2791
    %v2799 = vadd.f32 %v2790, %v2791
    %2800 = vst [vmem:[%s5] sm:$0xff] %v2792
    %2801 = vst [vmem:[%s5 + $0x8] sm:$0xff] %v2793
    %2802 = vst [vmem:[%s5 + $0x10] sm:$0xff] %v2794
    %2803 = vst [vmem:[%s5 + $0x18] sm:$0xff] %v2795
    %2804 = vst [vmem:[%s5 + $0x20] sm:$0xff] %v2796
    %2805 = vst [vmem:[%s5 + $0x28] sm:$0xff] %v2797
    %2806 = vst [vmem:[%s5 + $0x30] sm:$0xff] %v2798
    %2807 = vst [vmem:[%s5 + $0x38] sm:$0xff] %v2799
    // Predicated region
    $region30: #{_critic_forward.1} parent=1 // pred_check
      _
    $region31: #{_critic_forward.1} parent=1 // pred_check_branch
      %2809 = sbr.rel (0) target = $region33
    $region32: #{_critic_forward.1} parent=1 // pred_region
      _
    $region33: #{_critic_forward.1} parent=1 // pred_fallthru
      _
    // Predicated region
    $region34: #{_critic_forward.1} parent=1 // pred_check
      _
    $region35: #{_critic_forward.1} parent=1 // pred_check_branch
      %2811 = sbr.rel (0) target = $region37
    $region36: #{_critic_forward.1} parent=1 // pred_region
      _
    $region37: #{_critic_forward.1} parent=1 // pred_fallthru
      _
    %2812 = vsyncpa [#allocation3], 1
    %2813 = vsyncpa [#allocation5], 1

</llo_original>
